<compile_context>
chip_gen: v7x
topology: tpu7x:2x2x1
jax: 0.10.0
libtpu: 0.0.40
codegen_flags: <defaults>
</compile_context>

<pallas_src>
import functools

import jax
import jax.numpy as jnp
import numpy as np
from jax.experimental import pallas as pl
from jax.experimental.pallas import tpu as pltpu


def _mapping_g_kernel(wc_ref, bc_ref, z_ref, w_ref, b_ref, o_ref,
                      *, n_layers, neg_slope, eps, mxu_dtype):
    # wc_ref: SMEM (L,)   per-layer weight runtime_coef (he_std * lrmul)
    # bc_ref: SMEM (L,)   per-layer bias coef (lrmul)
    # z_ref : VMEM (TB, Din)       one batch tile of latents
    # w_ref : VMEM (L, Din, Dout)  stacked RAW weights, (in, out) layout,
    #                              stored in mxu_dtype (bf16 on v6e/v7x)
    # b_ref : VMEM (L, 1, Dout)    stacked raw biases (f32)
    # o_ref : VMEM (TB, Dout)
    x = z_ref[...].astype(jnp.float32)

    # Pixel norm: z * rsqrt(mean(z^2, axis=-1) + eps)  (XLU reduce + EUP rsqrt)
    ms = jnp.mean(x * x, axis=-1, keepdims=True)
    x = x * jax.lax.rsqrt(ms + eps)

    # Fused stack of ScaledParamLinear + LeakyReLU layers (static unroll).
    for i in range(n_layers):
        # Scaled-param hook folded into the (small) activation tile instead
        # of rescaling the full (Din, Dout) weight every grid step:
        #   (x * wc) @ W_raw  ==  x @ (W_raw * wc)   (wc is a per-layer scalar)
        xs = (x * wc_ref[i]).astype(mxu_dtype)
        y = jnp.dot(xs, w_ref[i], preferred_element_type=jnp.float32)
        y = y + b_ref[i] * bc_ref[i]
        # LeakyReLU(0.2): for slope < 1, max(y, slope*y) == leaky_relu(y).
        x = jnp.maximum(y, neg_slope * y)

    o_ref[...] = x.astype(o_ref.dtype)


def _round_up(x, m):
    return ((x + m - 1) // m) * m


def mapping_g(z, w_stack, b_stack, w_coefs, b_coefs, *,
              neg_slope=0.2, eps=1e-8, block_b=None,
              mxu_dtype=jnp.bfloat16):
    """MappingG.forward (use_class_labels=False).

    z       : (N, Din) latents
    w_stack : (L, Din, Dout) raw (unscaled) weights, (in, out) layout
    b_stack : (L, 1, Dout)   raw (unscaled) biases
    w_coefs : (L,) runtime weight coefficients (he_std * lrmul)
    b_coefs : (L,) runtime bias coefficients (lrmul)
    """
    # TODO(synk): class-conditional branch (use_class_labels=True: Embedding +
    # L2-normalize + concat) not implemented; default config has it disabled.
    n, din = z.shape
    n_layers, din_w, dout = w_stack.shape
    assert din == din_w

    # MXU operands in mxu_dtype (bf16 by default); everything else f32.
    w_stack = w_stack.astype(mxu_dtype)
    b_stack = b_stack.astype(jnp.float32)
    w_coefs = w_coefs.astype(jnp.float32)
    b_coefs = b_coefs.astype(jnp.float32)

    # Pick a large batch tile (MXU streaming) while keeping >= 2 grid steps
    # so both v7x TensorCores are used; cap at 512 rows (VMEM is not a
    # constraint: 512x128 f32 activations ~ 256 KiB, weights <= 0.5 MiB).
    if block_b is None:
        block_b = max(8, min(512, _round_up(pl.cdiv(n, 2), 8)))
    block_b = min(block_b, _round_up(n, 8))

    # Pad the batch to a tile multiple (padded rows compute garbage that is
    # sliced off; eps keeps the pixel norm NaN-free on zero rows).
    grid = pl.cdiv(n, block_b)
    n_pad = grid * block_b
    zp = jnp.pad(z, ((0, n_pad - n), (0, 0))) if n_pad != n else z

    kernel = functools.partial(_mapping_g_kernel, n_layers=n_layers,
                               neg_slope=neg_slope, eps=eps,
                               mxu_dtype=mxu_dtype)

    out = pl.pallas_call(
        kernel,
        out_shape=jax.ShapeDtypeStruct((n_pad, dout), z.dtype),
        grid_spec=pltpu.PrefetchScalarGridSpec(
            num_scalar_prefetch=0,
            grid=(grid,),
            in_specs=[
                # tiny per-layer scalars live in SMEM
                pl.BlockSpec(memory_space=pltpu.MemorySpace.SMEM),
                pl.BlockSpec(memory_space=pltpu.MemorySpace.SMEM),
                # one batch tile of latents per grid step
                pl.BlockSpec((block_b, din), lambda i: (i, 0)),
                # full stacked weights / biases, constant block index
                # -> fetched once, resident in VMEM across the grid
                pl.BlockSpec((n_layers, din, dout), lambda i: (0, 0, 0)),
                pl.BlockSpec((n_layers, 1, dout), lambda i: (0, 0, 0)),
            ],
            out_specs=pl.BlockSpec((block_b, dout), lambda i: (i, 0)),
        ),
        compiler_params=pltpu.CompilerParams(
            dimension_semantics=("parallel",)),
    )(w_coefs, b_coefs, zp, w_stack, b_stack)

    return out[:n] if n_pad != n else out


def mapping_g_reference(z, w_stack, b_stack, w_coefs, b_coefs,
                        *, neg_slope=0.2, eps=1e-8):
    """Pure-JAX f32 reference of the same forward pass."""
    x = z * jax.lax.rsqrt(jnp.mean(z * z, axis=1, keepdims=True) + eps)
    for i in range(w_stack.shape[0]):
        w_eff = w_stack[i] * w_coefs[i]
        b_eff = b_stack[i, 0] * b_coefs[i]
        y = jnp.dot(x, w_eff, precision=jax.lax.Precision.HIGHEST) + b_eff
        x = jnp.where(y >= 0.0, y, neg_slope * y)
    return x


if __name__ == "__main__":
    # Small-but-lane-aligned config consistent with the module:
    # z_dim = dim_latent = w_dim = 128, n_layers = 8, lrmul = 0.01,
    # gain = sqrt(2) (LeakyReLU), use_wscale = True, use_class_labels = False.
    Z_DIM = DIM_LATENT = W_DIM = 128
    N_LAYERS = 8
    BATCH = 20          # deliberately NOT a multiple of the tile -> tests padding
    LRMUL = 0.01
    GAIN = float(np.sqrt(2.0))

    key = jax.random.PRNGKey(0)
    k_w, k_b, k_z = jax.random.split(key, 3)

    # ScaledParamLinear init: raw weight ~ N(0, init_std), init_std = 1/lrmul.
    # Raw bias is zero-initialized in torch; we use a random raw bias here so
    # the bias scaling/broadcast path is actually exercised by the check.
    init_std = 1.0 / LRMUL
    raw_w_torch = jax.random.normal(
        k_w, (N_LAYERS, W_DIM, Z_DIM), jnp.float32) * init_std   # (L, out, in)
    w_stack = jnp.transpose(raw_w_torch, (0, 2, 1))              # (L, in, out)
    b_stack = jax.random.normal(
        k_b, (N_LAYERS, 1, W_DIM), jnp.float32) * 30.0           # raw bias

    fan_in = Z_DIM                                   # in_features per layer
    he_std = GAIN / np.sqrt(fan_in)
    w_coefs = jnp.full((N_LAYERS,), he_std * LRMUL, jnp.float32)  # use_wscale
    b_coefs = jnp.full((N_LAYERS,), LRMUL, jnp.float32)

    z = jax.random.normal(k_z, (BATCH, Z_DIM), jnp.float32)

    # f32 MXU path (validation) and bf16 MXU path (v6e/v7x fast path).
    out_f32 = mapping_g(z, w_stack, b_stack, w_coefs, b_coefs,
                        mxu_dtype=jnp.float32)
    out_bf16 = mapping_g(z, w_stack, b_stack, w_coefs, b_coefs)
    out_f32, out_bf16 = jax.block_until_ready((out_f32, out_bf16))
    assert out_f32.shape == (BATCH, W_DIM), out_f32.shape
    assert out_bf16.shape == (BATCH, W_DIM), out_bf16.shape

    ref = jax.block_until_ready(
        mapping_g_reference(z, w_stack, b_stack, w_coefs, b_coefs))

    err_f32 = float(jnp.max(jnp.abs(out_f32 - ref)))
    err_bf16 = float(jnp.max(jnp.abs(out_bf16 - ref)))
    assert jnp.allclose(out_f32, ref, atol=2e-2, rtol=2e-2), err_f32
    assert jnp.allclose(out_bf16, ref, atol=1e-1, rtol=1e-1), err_bf16
    print("KERNEL_OK")
</pallas_src>

<mosaic_0001>
module attributes {stable_mosaic.version = 11 : i64} {
  func.func @_mapping_g_kernel(%arg0: i32, %arg1: memref<8xf32, #tpu.memory_space<smem>>, %arg2: memref<8xf32, #tpu.memory_space<smem>>, %arg3: memref<16x128xf32, #tpu.memory_space<vmem>>, %arg4: memref<8x128x128xf32, #tpu.memory_space<vmem>>, %arg5: memref<8x1x128xf32, #tpu.memory_space<vmem>>, %arg6: memref<16x128xf32, #tpu.memory_space<vmem>>) attributes {dimension_semantics = [#tpu.dimension_semantics<parallel>], iteration_bounds = array<i64: 2>, scalar_prefetch = 0 : i64, scratch_operands = 0 : i64, tpu.core_type = #tpu.core_type<tc>, window_params = [{transform_indices = @transform_0, window_bounds = array<i64: 8>}, {transform_indices = @transform_1, window_bounds = array<i64: 8>}, {transform_indices = @transform_2, window_bounds = array<i64: 16, 128>}, {pipeline_mode = #tpu.pipeline_mode<synchronous>, transform_indices = @transform_3, window_bounds = array<i64: 8, 128, 128>}, {pipeline_mode = #tpu.pipeline_mode<synchronous>, transform_indices = @transform_4, window_bounds = array<i64: 8, 1, 128>}, {transform_indices = @transform_5, window_bounds = array<i64: 16, 128>}]} {
    %c0 = arith.constant 0 : index
    %c0_0 = arith.constant 0 : index
    %0 = vector.load %arg3[%c0, %c0_0] : memref<16x128xf32, #tpu.memory_space<vmem>>, vector<16x128xf32>
    %1 = arith.mulf %0, %0 : vector<16x128xf32>
    %cst = arith.constant dense<0.000000e+00> : vector<16xf32>
    %2 = vector.multi_reduction <add>, %1, %cst [1] : vector<16x128xf32> to vector<16xf32>
    %3 = vector.shape_cast %2 : vector<16xf32> to vector<16x1xf32>
    %cst_1 = arith.constant 1.280000e+02 : f32
    %4 = vector.broadcast %cst_1 : f32 to vector<16x1xf32>
    %5 = arith.divf %3, %4 : vector<16x1xf32>
    %cst_2 = arith.constant 9.99999993E-9 : f32
    %6 = vector.broadcast %cst_2 : f32 to vector<16x1xf32>
    %7 = arith.addf %5, %6 : vector<16x1xf32>
    %8 = math.rsqrt %7 : vector<16x1xf32>
    %9 = vector.broadcast %8 : vector<16x1xf32> to vector<16x128xf32>
    %10 = arith.mulf %0, %9 : vector<16x128xf32>
    %c0_3 = arith.constant 0 : index
    %11 = memref.load %arg1[%c0_3] : memref<8xf32, #tpu.memory_space<smem>>
    %12 = vector.broadcast %11 : f32 to vector<16x128xf32>
    %13 = arith.mulf %10, %12 : vector<16x128xf32>
    %c0_4 = arith.constant 0 : index
    %c0_5 = arith.constant 0 : index
    %c0_6 = arith.constant 0 : index
    %14 = vector.load %arg4[%c0_4, %c0_5, %c0_6] : memref<8x128x128xf32, #tpu.memory_space<vmem>>, vector<1x128x128xf32>
    %15 = vector.shape_cast %14 : vector<1x128x128xf32> to vector<128x128xf32>
    %cst_7 = arith.constant dense<0.000000e+00> : vector<16x128xf32>
    %16 = tpu.matmul %13, %15, %cst_7 {dimension_numbers = #tpu.dot_dimension_numbers<[1], [0], [0], [1], [0, 0, 1, 1], [], []>} : vector<16x128xf32>, vector<128x128xf32>, vector<16x128xf32> -> vector<16x128xf32>
    %c0_8 = arith.constant 0 : index
    %c0_9 = arith.constant 0 : index
    %c0_10 = arith.constant 0 : index
    %17 = vector.load %arg5[%c0_8, %c0_9, %c0_10] : memref<8x1x128xf32, #tpu.memory_space<vmem>>, vector<1x1x128xf32>
    %18 = vector.shape_cast %17 : vector<1x1x128xf32> to vector<1x128xf32>
    %c0_11 = arith.constant 0 : index
    %19 = memref.load %arg2[%c0_11] : memref<8xf32, #tpu.memory_space<smem>>
    %20 = vector.broadcast %19 : f32 to vector<1x128xf32>
    %21 = arith.mulf %18, %20 : vector<1x128xf32>
    %22 = vector.broadcast %21 : vector<1x128xf32> to vector<16x128xf32>
    %23 = arith.addf %16, %22 : vector<16x128xf32>
    %cst_12 = arith.constant 2.000000e-01 : f32
    %24 = vector.broadcast %cst_12 : f32 to vector<16x128xf32>
    %25 = arith.mulf %24, %23 : vector<16x128xf32>
    %26 = arith.maximumf %23, %25 : vector<16x128xf32>
    %c1 = arith.constant 1 : index
    %27 = memref.load %arg1[%c1] : memref<8xf32, #tpu.memory_space<smem>>
    %28 = vector.broadcast %27 : f32 to vector<16x128xf32>
    %29 = arith.mulf %26, %28 : vector<16x128xf32>
    %c1_13 = arith.constant 1 : index
    %c0_14 = arith.constant 0 : index
    %c0_15 = arith.constant 0 : index
    %30 = vector.load %arg4[%c1_13, %c0_14, %c0_15] : memref<8x128x128xf32, #tpu.memory_space<vmem>>, vector<1x128x128xf32>
    %31 = vector.shape_cast %30 : vector<1x128x128xf32> to vector<128x128xf32>
    %cst_16 = arith.constant dense<0.000000e+00> : vector<16x128xf32>
    %32 = tpu.matmul %29, %31, %cst_16 {dimension_numbers = #tpu.dot_dimension_numbers<[1], [0], [0], [1], [0, 0, 1, 1], [], []>} : vector<16x128xf32>, vector<128x128xf32>, vector<16x128xf32> -> vector<16x128xf32>
    %c1_17 = arith.constant 1 : index
    %c0_18 = arith.constant 0 : index
    %c0_19 = arith.constant 0 : index
    %33 = vector.load %arg5[%c1_17, %c0_18, %c0_19] : memref<8x1x128xf32, #tpu.memory_space<vmem>>, vector<1x1x128xf32>
    %34 = vector.shape_cast %33 : vector<1x1x128xf32> to vector<1x128xf32>
    %c1_20 = arith.constant 1 : index
    %35 = memref.load %arg2[%c1_20] : memref<8xf32, #tpu.memory_space<smem>>
    %36 = vector.broadcast %35 : f32 to vector<1x128xf32>
    %37 = arith.mulf %34, %36 : vector<1x128xf32>
    %38 = vector.broadcast %37 : vector<1x128xf32> to vector<16x128xf32>
    %39 = arith.addf %32, %38 : vector<16x128xf32>
    %cst_21 = arith.constant 2.000000e-01 : f32
    %40 = vector.broadcast %cst_21 : f32 to vector<16x128xf32>
    %41 = arith.mulf %40, %39 : vector<16x128xf32>
    %42 = arith.maximumf %39, %41 : vector<16x128xf32>
    %c2 = arith.constant 2 : index
    %43 = memref.load %arg1[%c2] : memref<8xf32, #tpu.memory_space<smem>>
    %44 = vector.broadcast %43 : f32 to vector<16x128xf32>
    %45 = arith.mulf %42, %44 : vector<16x128xf32>
    %c2_22 = arith.constant 2 : index
    %c0_23 = arith.constant 0 : index
    %c0_24 = arith.constant 0 : index
    %46 = vector.load %arg4[%c2_22, %c0_23, %c0_24] : memref<8x128x128xf32, #tpu.memory_space<vmem>>, vector<1x128x128xf32>
    %47 = vector.shape_cast %46 : vector<1x128x128xf32> to vector<128x128xf32>
    %cst_25 = arith.constant dense<0.000000e+00> : vector<16x128xf32>
    %48 = tpu.matmul %45, %47, %cst_25 {dimension_numbers = #tpu.dot_dimension_numbers<[1], [0], [0], [1], [0, 0, 1, 1], [], []>} : vector<16x128xf32>, vector<128x128xf32>, vector<16x128xf32> -> vector<16x128xf32>
    %c2_26 = arith.constant 2 : index
    %c0_27 = arith.constant 0 : index
    %c0_28 = arith.constant 0 : index
    %49 = vector.load %arg5[%c2_26, %c0_27, %c0_28] : memref<8x1x128xf32, #tpu.memory_space<vmem>>, vector<1x1x128xf32>
    %50 = vector.shape_cast %49 : vector<1x1x128xf32> to vector<1x128xf32>
    %c2_29 = arith.constant 2 : index
    %51 = memref.load %arg2[%c2_29] : memref<8xf32, #tpu.memory_space<smem>>
    %52 = vector.broadcast %51 : f32 to vector<1x128xf32>
    %53 = arith.mulf %50, %52 : vector<1x128xf32>
    %54 = vector.broadcast %53 : vector<1x128xf32> to vector<16x128xf32>
    %55 = arith.addf %48, %54 : vector<16x128xf32>
    %cst_30 = arith.constant 2.000000e-01 : f32
    %56 = vector.broadcast %cst_30 : f32 to vector<16x128xf32>
    %57 = arith.mulf %56, %55 : vector<16x128xf32>
    %58 = arith.maximumf %55, %57 : vector<16x128xf32>
    %c3 = arith.constant 3 : index
    %59 = memref.load %arg1[%c3] : memref<8xf32, #tpu.memory_space<smem>>
    %60 = vector.broadcast %59 : f32 to vector<16x128xf32>
    %61 = arith.mulf %58, %60 : vector<16x128xf32>
    %c3_31 = arith.constant 3 : index
    %c0_32 = arith.constant 0 : index
    %c0_33 = arith.constant 0 : index
    %62 = vector.load %arg4[%c3_31, %c0_32, %c0_33] : memref<8x128x128xf32, #tpu.memory_space<vmem>>, vector<1x128x128xf32>
    %63 = vector.shape_cast %62 : vector<1x128x128xf32> to vector<128x128xf32>
    %cst_34 = arith.constant dense<0.000000e+00> : vector<16x128xf32>
    %64 = tpu.matmul %61, %63, %cst_34 {dimension_numbers = #tpu.dot_dimension_numbers<[1], [0], [0], [1], [0, 0, 1, 1], [], []>} : vector<16x128xf32>, vector<128x128xf32>, vector<16x128xf32> -> vector<16x128xf32>
    %c3_35 = arith.constant 3 : index
    %c0_36 = arith.constant 0 : index
    %c0_37 = arith.constant 0 : index
    %65 = vector.load %arg5[%c3_35, %c0_36, %c0_37] : memref<8x1x128xf32, #tpu.memory_space<vmem>>, vector<1x1x128xf32>
    %66 = vector.shape_cast %65 : vector<1x1x128xf32> to vector<1x128xf32>
    %c3_38 = arith.constant 3 : index
    %67 = memref.load %arg2[%c3_38] : memref<8xf32, #tpu.memory_space<smem>>
    %68 = vector.broadcast %67 : f32 to vector<1x128xf32>
    %69 = arith.mulf %66, %68 : vector<1x128xf32>
    %70 = vector.broadcast %69 : vector<1x128xf32> to vector<16x128xf32>
    %71 = arith.addf %64, %70 : vector<16x128xf32>
    %cst_39 = arith.constant 2.000000e-01 : f32
    %72 = vector.broadcast %cst_39 : f32 to vector<16x128xf32>
    %73 = arith.mulf %72, %71 : vector<16x128xf32>
    %74 = arith.maximumf %71, %73 : vector<16x128xf32>
    %c4 = arith.constant 4 : index
    %75 = memref.load %arg1[%c4] : memref<8xf32, #tpu.memory_space<smem>>
    %76 = vector.broadcast %75 : f32 to vector<16x128xf32>
    %77 = arith.mulf %74, %76 : vector<16x128xf32>
    %c4_40 = arith.constant 4 : index
    %c0_41 = arith.constant 0 : index
    %c0_42 = arith.constant 0 : index
    %78 = vector.load %arg4[%c4_40, %c0_41, %c0_42] : memref<8x128x128xf32, #tpu.memory_space<vmem>>, vector<1x128x128xf32>
    %79 = vector.shape_cast %78 : vector<1x128x128xf32> to vector<128x128xf32>
    %cst_43 = arith.constant dense<0.000000e+00> : vector<16x128xf32>
    %80 = tpu.matmul %77, %79, %cst_43 {dimension_numbers = #tpu.dot_dimension_numbers<[1], [0], [0], [1], [0, 0, 1, 1], [], []>} : vector<16x128xf32>, vector<128x128xf32>, vector<16x128xf32> -> vector<16x128xf32>
    %c4_44 = arith.constant 4 : index
    %c0_45 = arith.constant 0 : index
    %c0_46 = arith.constant 0 : index
    %81 = vector.load %arg5[%c4_44, %c0_45, %c0_46] : memref<8x1x128xf32, #tpu.memory_space<vmem>>, vector<1x1x128xf32>
    %82 = vector.shape_cast %81 : vector<1x1x128xf32> to vector<1x128xf32>
    %c4_47 = arith.constant 4 : index
    %83 = memref.load %arg2[%c4_47] : memref<8xf32, #tpu.memory_space<smem>>
    %84 = vector.broadcast %83 : f32 to vector<1x128xf32>
    %85 = arith.mulf %82, %84 : vector<1x128xf32>
    %86 = vector.broadcast %85 : vector<1x128xf32> to vector<16x128xf32>
    %87 = arith.addf %80, %86 : vector<16x128xf32>
    %cst_48 = arith.constant 2.000000e-01 : f32
    %88 = vector.broadcast %cst_48 : f32 to vector<16x128xf32>
    %89 = arith.mulf %88, %87 : vector<16x128xf32>
    %90 = arith.maximumf %87, %89 : vector<16x128xf32>
    %c5 = arith.constant 5 : index
    %91 = memref.load %arg1[%c5] : memref<8xf32, #tpu.memory_space<smem>>
    %92 = vector.broadcast %91 : f32 to vector<16x128xf32>
    %93 = arith.mulf %90, %92 : vector<16x128xf32>
    %c5_49 = arith.constant 5 : index
    %c0_50 = arith.constant 0 : index
    %c0_51 = arith.constant 0 : index
    %94 = vector.load %arg4[%c5_49, %c0_50, %c0_51] : memref<8x128x128xf32, #tpu.memory_space<vmem>>, vector<1x128x128xf32>
    %95 = vector.shape_cast %94 : vector<1x128x128xf32> to vector<128x128xf32>
    %cst_52 = arith.constant dense<0.000000e+00> : vector<16x128xf32>
    %96 = tpu.matmul %93, %95, %cst_52 {dimension_numbers = #tpu.dot_dimension_numbers<[1], [0], [0], [1], [0, 0, 1, 1], [], []>} : vector<16x128xf32>, vector<128x128xf32>, vector<16x128xf32> -> vector<16x128xf32>
    %c5_53 = arith.constant 5 : index
    %c0_54 = arith.constant 0 : index
    %c0_55 = arith.constant 0 : index
    %97 = vector.load %arg5[%c5_53, %c0_54, %c0_55] : memref<8x1x128xf32, #tpu.memory_space<vmem>>, vector<1x1x128xf32>
    %98 = vector.shape_cast %97 : vector<1x1x128xf32> to vector<1x128xf32>
    %c5_56 = arith.constant 5 : index
    %99 = memref.load %arg2[%c5_56] : memref<8xf32, #tpu.memory_space<smem>>
    %100 = vector.broadcast %99 : f32 to vector<1x128xf32>
    %101 = arith.mulf %98, %100 : vector<1x128xf32>
    %102 = vector.broadcast %101 : vector<1x128xf32> to vector<16x128xf32>
    %103 = arith.addf %96, %102 : vector<16x128xf32>
    %cst_57 = arith.constant 2.000000e-01 : f32
    %104 = vector.broadcast %cst_57 : f32 to vector<16x128xf32>
    %105 = arith.mulf %104, %103 : vector<16x128xf32>
    %106 = arith.maximumf %103, %105 : vector<16x128xf32>
    %c6 = arith.constant 6 : index
    %107 = memref.load %arg1[%c6] : memref<8xf32, #tpu.memory_space<smem>>
    %108 = vector.broadcast %107 : f32 to vector<16x128xf32>
    %109 = arith.mulf %106, %108 : vector<16x128xf32>
    %c6_58 = arith.constant 6 : index
    %c0_59 = arith.constant 0 : index
    %c0_60 = arith.constant 0 : index
    %110 = vector.load %arg4[%c6_58, %c0_59, %c0_60] : memref<8x128x128xf32, #tpu.memory_space<vmem>>, vector<1x128x128xf32>
    %111 = vector.shape_cast %110 : vector<1x128x128xf32> to vector<128x128xf32>
    %cst_61 = arith.constant dense<0.000000e+00> : vector<16x128xf32>
    %112 = tpu.matmul %109, %111, %cst_61 {dimension_numbers = #tpu.dot_dimension_numbers<[1], [0], [0], [1], [0, 0, 1, 1], [], []>} : vector<16x128xf32>, vector<128x128xf32>, vector<16x128xf32> -> vector<16x128xf32>
    %c6_62 = arith.constant 6 : index
    %c0_63 = arith.constant 0 : index
    %c0_64 = arith.constant 0 : index
    %113 = vector.load %arg5[%c6_62, %c0_63, %c0_64] : memref<8x1x128xf32, #tpu.memory_space<vmem>>, vector<1x1x128xf32>
    %114 = vector.shape_cast %113 : vector<1x1x128xf32> to vector<1x128xf32>
    %c6_65 = arith.constant 6 : index
    %115 = memref.load %arg2[%c6_65] : memref<8xf32, #tpu.memory_space<smem>>
    %116 = vector.broadcast %115 : f32 to vector<1x128xf32>
    %117 = arith.mulf %114, %116 : vector<1x128xf32>
    %118 = vector.broadcast %117 : vector<1x128xf32> to vector<16x128xf32>
    %119 = arith.addf %112, %118 : vector<16x128xf32>
    %cst_66 = arith.constant 2.000000e-01 : f32
    %120 = vector.broadcast %cst_66 : f32 to vector<16x128xf32>
    %121 = arith.mulf %120, %119 : vector<16x128xf32>
    %122 = arith.maximumf %119, %121 : vector<16x128xf32>
    %c7 = arith.constant 7 : index
    %123 = memref.load %arg1[%c7] : memref<8xf32, #tpu.memory_space<smem>>
    %124 = vector.broadcast %123 : f32 to vector<16x128xf32>
    %125 = arith.mulf %122, %124 : vector<16x128xf32>
    %c7_67 = arith.constant 7 : index
    %c0_68 = arith.constant 0 : index
    %c0_69 = arith.constant 0 : index
    %126 = vector.load %arg4[%c7_67, %c0_68, %c0_69] : memref<8x128x128xf32, #tpu.memory_space<vmem>>, vector<1x128x128xf32>
    %127 = vector.shape_cast %126 : vector<1x128x128xf32> to vector<128x128xf32>
    %cst_70 = arith.constant dense<0.000000e+00> : vector<16x128xf32>
    %128 = tpu.matmul %125, %127, %cst_70 {dimension_numbers = #tpu.dot_dimension_numbers<[1], [0], [0], [1], [0, 0, 1, 1], [], []>} : vector<16x128xf32>, vector<128x128xf32>, vector<16x128xf32> -> vector<16x128xf32>
    %c7_71 = arith.constant 7 : index
    %c0_72 = arith.constant 0 : index
    %c0_73 = arith.constant 0 : index
    %129 = vector.load %arg5[%c7_71, %c0_72, %c0_73] : memref<8x1x128xf32, #tpu.memory_space<vmem>>, vector<1x1x128xf32>
    %130 = vector.shape_cast %129 : vector<1x1x128xf32> to vector<1x128xf32>
    %c7_74 = arith.constant 7 : index
    %131 = memref.load %arg2[%c7_74] : memref<8xf32, #tpu.memory_space<smem>>
    %132 = vector.broadcast %131 : f32 to vector<1x128xf32>
    %133 = arith.mulf %130, %132 : vector<1x128xf32>
    %134 = vector.broadcast %133 : vector<1x128xf32> to vector<16x128xf32>
    %135 = arith.addf %128, %134 : vector<16x128xf32>
    %cst_75 = arith.constant 2.000000e-01 : f32
    %136 = vector.broadcast %cst_75 : f32 to vector<16x128xf32>
    %137 = arith.mulf %136, %135 : vector<16x128xf32>
    %138 = arith.maximumf %135, %137 : vector<16x128xf32>
    %c0_76 = arith.constant 0 : index
    %c0_77 = arith.constant 0 : index
    %139 = vector.load %arg6[%c0_76, %c0_77] : memref<16x128xf32, #tpu.memory_space<vmem>>, vector<16x128xf32>
    tpu.vector_store %arg6[%c0_76, %c0_77], %138 {strides = array<i32>} : memref<16x128xf32, #tpu.memory_space<vmem>>, vector<16x128xf32>,
    return
  }
  func.func @transform_0(%arg0: i32) -> i32 {
    %c0_i32 = arith.constant 0 : i32
    %c0_i32_0 = arith.constant 0 : i32
    return %c0_i32 : i32
  }
  func.func @transform_1(%arg0: i32) -> i32 {
    %c0_i32 = arith.constant 0 : i32
    %c0_i32_0 = arith.constant 0 : i32
    return %c0_i32 : i32
  }
  func.func @transform_2(%arg0: i32) -> (i32, i32) {
    %c0_i32 = arith.constant 0 : i32
    %c0_i32_0 = arith.constant 0 : i32
    return %arg0, %c0_i32 : i32, i32
  }
  func.func @transform_3(%arg0: i32) -> (i32, i32, i32) {
    %c0_i32 = arith.constant 0 : i32
    %c0_i32_0 = arith.constant 0 : i32
    %c0_i32_1 = arith.constant 0 : i32
    %c0_i32_2 = arith.constant 0 : i32
    return %c0_i32, %c0_i32_0, %c0_i32_1 : i32, i32, i32
  }
  func.func @transform_4(%arg0: i32) -> (i32, i32, i32) {
    %c0_i32 = arith.constant 0 : i32
    %c0_i32_0 = arith.constant 0 : i32
    %c0_i32_1 = arith.constant 0 : i32
    %c0_i32_2 = arith.constant 0 : i32
    return %c0_i32, %c0_i32_0, %c0_i32_1 : i32, i32, i32
  }
  func.func @transform_5(%arg0: i32) -> (i32, i32) {
    %c0_i32 = arith.constant 0 : i32
    %c0_i32_0 = arith.constant 0 : i32
    return %arg0, %c0_i32 : i32, i32
  }
}

</mosaic_0001>

<llo_original>
// kernel: tpu_custom_call.1
$region0: #{tpu_custom_call.1}
  #allocation0 [shape = 'u32[]', space=smem, size = 0x4, offset = 0x4, fixed_abs, tag = 'smem constant byte address 0x4 - core index']
  #allocation1 [shape = 'u32[144,128]{1,0:T(1,128)}', space=vmem, size = 0x12000, scoped, tag = 'internal scratch']
  %s0 = inlined_call_operand.hbm [shape: f32[8], index: 0, kind: input, shape index: {}]
  %s1 = inlined_call_operand.vmem [shape: f32[8], index: 1, kind: input, shape index: {}]
  %s2 = inlined_call_operand.hbm [shape: f32[32,128], index: 2, kind: input, shape index: {}]
  %s3 = inlined_call_operand.hbm [shape: f32[8,128,128], index: 3, kind: input, shape index: {}]
  %s4 = inlined_call_operand.vmem [shape: f32[8,1,128], index: 4, kind: input, shape index: {}]
  %s5 = inlined_call_operand.hbm [shape: f32[32,128], index: 5, kind: output, shape index: {}]
  %s6 = sld [smem:[#allocation0]]
  $region69: #{tpu_custom_call.1} parent=0
    _
  %s8 = ssub.s32 1, %s6
  %s9 = scalar_select 0, %s8, %s6
  $region1: #{tpu_custom_call.1} parent=0
    #allocation2 [shape = 'u8[512]{0}', space=smem, size = 0x200, scoped, tag = 'input window, operand 0, single buffered']
    #allocation3 [shape = 's32[2]{0}', space=sflag, size = 0x8, scoped, tag = 'scoped memory for tpu_custom_call.1']
    #allocation4 [shape = 's32[2]{0}', space=sflag, size = 0x8, scoped, tag = 'scoped memory for tpu_custom_call.1']
    #allocation5 [shape = 's32[2]{0}', space=sflag, size = 0x8, scoped, tag = 'scoped memory for tpu_custom_call.1']
    #allocation6 [shape = 's32[2]{0}', space=sflag, size = 0x8, scoped, tag = 'scoped memory for tpu_custom_call.1']
    #allocation7 [shape = 'u8[512]{0}', space=smem, size = 0x200, scoped, tag = 'input window, operand 1, single buffered']
    #allocation8 [shape = 'u8[16384]{0}', space=vmem, size = 0x4000, scoped, tag = 'input window, operand 2']
    #allocation9 [shape = 'u8[524288]{0}', space=vmem, size = 0x80000, scoped, tag = 'input window, operand 3, single buffered']
    #allocation10 [shape = 's32[1]{0}', space=sflag, size = 0x4, scoped, tag = 'scoped memory for tpu_custom_call.1']
    #allocation11 [shape = 'u8[16384]{0}', space=vmem, size = 0x4000, scoped, tag = 'output window, operand 0']
    %10 = vsyncpa [#allocation5], 0
    %11 = vsyncpa [#allocation6], 0
    %12 = vsyncpa [#allocation3], 0
    %s13 = scalar_lea.sflag [#allocation3], 1
    %14 = vsyncpa %s13, 0
    %15 = vsyncpa [#allocation10], 0
    %16 = vsyncpa [#allocation4], 0
    %s17 = scalar_lea.sflag [#allocation4], 1
    %18 = vsyncpa %s17, 0
    loop: start=0, step=1, limit=4
    $region2: #{tpu_custom_call.1} parent=1 // loop_pre_header
      _
    $region3: #{tpu_custom_call.1} parent=1 // loop_header
      %s20 = sphi 0, %s24
      %p21 = scmp.ge.s32.totalorder %s20, 4
      %s28 = sphi 0, %s28
      %s30 = sphi 0, %s28
      %s31 = sphi 0, %s30
      %s45 = sphi 0, %s31
      %s49 = sphi 0, %s49
      %s51 = sphi 0, %s49
      %s52 = sphi 0, %s51
      %s66 = sphi 0, %s52
      %s72 = sphi 0, %s74
      %s75 = sphi 0, %s72
      %s76 = sphi 0, %s75
      %s92 = sphi 0, %s76
      %s96 = sphi 0, %s96
      %s98 = sphi 0, %s96
      %s99 = sphi 0, %s98
      %s113 = sphi 0, %s99
      %s117 = sphi 0, %s117
      %s119 = sphi 0, %s117
      %s120 = sphi 0, %s119
      %s134 = sphi 0, %s120
      %s140 = sphi 0, %s142
      %s143 = sphi 0, %s140
      %s144 = sphi 0, %s143
      %s160 = sphi 0, %s144
    $region4: #{tpu_custom_call.1} parent=1 // loop_header_branch
      %23 = sbr.rel (%p21) target = $region8
    $region5: #{tpu_custom_call.1} parent=1 // loop_body
      %s25 = ssub.s32 %s20, 1
      %s26 = ssub.s32 %s20, 2
      %s27 = sadd.s32 %s20, 1
      %s29 = sadd.s32 %s28, 1
      %p32 = scmp.eq.s32.totalorder %s20, 1
      %p33 = scmp.ne.s32.totalorder %s28, %s30
      %p34 = scmp.eq.s32.totalorder %s20, 0
      %p35 = por %p33, %p34
      %p36 = scmp.ne.s32.totalorder %s28, %s30
      %p37 = scmp.eq.s32.totalorder %s25, 1
      %p38 = por %p36, %p37
      %p39 = scmp.ne.s32.totalorder %s30, %s31
      %p40 = scmp.eq.s32.totalorder %s25, 0
      %p41 = por %p39, %p40
      %p42 = scmp.ne.s32.totalorder %s30, %s31
      %p43 = scmp.eq.s32.totalorder %s26, 1
      %p44 = por %p42, %p43
      %p46 = scmp.ne.s32.totalorder %s31, %s45
      %p47 = scmp.eq.s32.totalorder %s26, 0
      %p48 = por %p46, %p47
      %s50 = sadd.s32 %s49, 1
      %p53 = scmp.eq.s32.totalorder %s20, 1
      %p54 = scmp.ne.s32.totalorder %s49, %s51
      %p55 = scmp.eq.s32.totalorder %s20, 0
      %p56 = por %p54, %p55
      %p57 = scmp.ne.s32.totalorder %s49, %s51
      %p58 = scmp.eq.s32.totalorder %s25, 1
      %p59 = por %p57, %p58
      %p60 = scmp.ne.s32.totalorder %s51, %s52
      %p61 = scmp.eq.s32.totalorder %s25, 0
      %p62 = por %p60, %p61
      %p63 = scmp.ne.s32.totalorder %s51, %s52
      %p64 = scmp.eq.s32.totalorder %s26, 1
      %p65 = por %p63, %p64
      %p67 = scmp.ne.s32.totalorder %s52, %s66
      %p68 = scmp.eq.s32.totalorder %s26, 0
      %p69 = por %p67, %p68
      %s70 = ssub.s32 %s20, %s27
      %p71 = scmp.eq.s32.totalorder %s70, 0
      %s73 = sadd.s32 %s72, 1
      %s74 = scalar_select %p71, %s72, %s73
      %p77 = pneg %p71
      %p78 = scmp.eq.s32.totalorder %s20, 1
      %p79 = por %p77, %p78
      %p80 = scmp.ne.s32.totalorder %s72, %s75
      %p81 = scmp.eq.s32.totalorder %s20, 0
      %p82 = por %p80, %p81
      %p83 = scmp.ne.s32.totalorder %s72, %s75
      %p84 = scmp.eq.s32.totalorder %s25, 1
      %p85 = por %p83, %p84
      %p86 = scmp.ne.s32.totalorder %s75, %s76
      %p87 = scmp.eq.s32.totalorder %s25, 0
      %p88 = por %p86, %p87
      %p89 = scmp.ne.s32.totalorder %s75, %s76
      %p90 = scmp.eq.s32.totalorder %s26, 1
      %p91 = por %p89, %p90
      %p93 = scmp.ne.s32.totalorder %s76, %s92
      %p94 = scmp.eq.s32.totalorder %s26, 0
      %p95 = por %p93, %p94
      %s97 = sadd.s32 %s96, 1
      %p100 = scmp.eq.s32.totalorder %s20, 1
      %p101 = scmp.ne.s32.totalorder %s96, %s98
      %p102 = scmp.eq.s32.totalorder %s20, 0
      %p103 = por %p101, %p102
      %p104 = scmp.ne.s32.totalorder %s96, %s98
      %p105 = scmp.eq.s32.totalorder %s25, 1
      %p106 = por %p104, %p105
      %p107 = scmp.ne.s32.totalorder %s98, %s99
      %p108 = scmp.eq.s32.totalorder %s25, 0
      %p109 = por %p107, %p108
      %p110 = scmp.ne.s32.totalorder %s98, %s99
      %p111 = scmp.eq.s32.totalorder %s26, 1
      %p112 = por %p110, %p111
      %p114 = scmp.ne.s32.totalorder %s99, %s113
      %p115 = scmp.eq.s32.totalorder %s26, 0
      %p116 = por %p114, %p115
      %s118 = sadd.s32 %s117, 1
      %p121 = scmp.eq.s32.totalorder %s20, 1
      %p122 = scmp.ne.s32.totalorder %s117, %s119
      %p123 = scmp.eq.s32.totalorder %s20, 0
      %p124 = por %p122, %p123
      %p125 = scmp.ne.s32.totalorder %s117, %s119
      %p126 = scmp.eq.s32.totalorder %s25, 1
      %p127 = por %p125, %p126
      %p128 = scmp.ne.s32.totalorder %s119, %s120
      %p129 = scmp.eq.s32.totalorder %s25, 0
      %p130 = por %p128, %p129
      %p131 = scmp.ne.s32.totalorder %s119, %s120
      %p132 = scmp.eq.s32.totalorder %s26, 1
      %p133 = por %p131, %p132
      %p135 = scmp.ne.s32.totalorder %s120, %s134
      %p136 = scmp.eq.s32.totalorder %s26, 0
      %p137 = por %p135, %p136
      %s138 = ssub.s32 %s20, %s27
      %p139 = scmp.eq.s32.totalorder %s138, 0
      %s141 = sadd.s32 %s140, 1
      %s142 = scalar_select %p139, %s140, %s141
      %p145 = pneg %p139
      %p146 = scmp.eq.s32.totalorder %s20, 1
      %p147 = por %p145, %p146
      %p148 = scmp.ne.s32.totalorder %s140, %s143
      %p149 = scmp.eq.s32.totalorder %s20, 0
      %p150 = por %p148, %p149
      %p151 = scmp.ne.s32.totalorder %s140, %s143
      %p152 = scmp.eq.s32.totalorder %s25, 1
      %p153 = por %p151, %p152
      %p154 = scmp.ne.s32.totalorder %s143, %s144
      %p155 = scmp.eq.s32.totalorder %s25, 0
      %p156 = por %p154, %p155
      %p157 = scmp.ne.s32.totalorder %s143, %s144
      %p158 = scmp.eq.s32.totalorder %s26, 1
      %p159 = por %p157, %p158
      %p161 = scmp.ne.s32.totalorder %s144, %s160
      %p162 = scmp.eq.s32.totalorder %s26, 0
      %p163 = por %p161, %p162
      %p164 = scmp.le.s32.totalorder 1, %s20
      %p165 = scmp.lt.s32.totalorder %s20, 3
      %p166 = pnand %p164, %p165
      %p167 = pneg %p166
      // Predicated region
      $region9: #{tpu_custom_call.1} parent=5 // pred_check
        _
      $region10: #{tpu_custom_call.1} parent=5 // pred_check_branch
        %169 = sbr.rel (%p166) target = $region12
      $region11: #{tpu_custom_call.1} parent=5 // pred_region
        %s170 = ssub.s32 %s20, 1
        // Predicated region
        $region13: #{tpu_custom_call.1} parent=11 // pred_check
          %p171 = pneg %p41
        $region14: #{tpu_custom_call.1} parent=11 // pred_check_branch
          %173 = sbr.rel (%p171) target = $region16
        $region15: #{tpu_custom_call.1} parent=11 // pred_region
          %s175 = ssub.s32 16, 16
          %176 = vsyncadd [#allocation5], %s175
          %179 = dma.hbm_to_smem %s0, 16, [#allocation2], [#allocation5]
        $region16: #{tpu_custom_call.1} parent=11 // pred_fallthru
          _
        // Predicated region
        $region17: #{tpu_custom_call.1} parent=11 // pred_check
          %p180 = pneg %p62
        $region18: #{tpu_custom_call.1} parent=11 // pred_check_branch
          %182 = sbr.rel (%p180) target = $region20
        $region19: #{tpu_custom_call.1} parent=11 // pred_region
          %s184 = ssub.s32 16, 16
          %185 = vsyncadd [#allocation6], %s184
          %s187 = sshll.u32 %s1, 4
          %s188 = int_to_ptr.vmem [resolvable:$true] %s187
          %190 = dma.vmem_to_smem %s188, 16, [#allocation7], [#allocation6]
        $region20: #{tpu_custom_call.1} parent=11 // pred_fallthru
          _
        // Predicated region
        $region21: #{tpu_custom_call.1} parent=11 // pred_check
          %p191 = pneg %p109
        $region22: #{tpu_custom_call.1} parent=11 // pred_check_branch
          %193 = sbr.rel (%p191) target = $region24
        $region23: #{tpu_custom_call.1} parent=11 // pred_region
          %s195 = ssub.s32 16384, 16384
          %196 = vsyncadd [#allocation10], %s195
          %s197 = sshll.u32 [#allocation9], 4
          %s198 = int_to_ptr.vmem [resolvable:$true] %s197
          %203 = dma.hbm_to_vmem [thread:$0]  %s3, 16384, %s198, [#allocation10], 128, 128, 8
        $region24: #{tpu_custom_call.1} parent=11 // pred_fallthru
          _
        // Predicated region
        $region25: #{tpu_custom_call.1} parent=11 // pred_check
          %p204 = pneg %p130
        $region26: #{tpu_custom_call.1} parent=11 // pred_check_branch
          %206 = sbr.rel (%p204) target = $region28
        $region27: #{tpu_custom_call.1} parent=11 // pred_region
          _
        $region28: #{tpu_custom_call.1} parent=11 // pred_fallthru
          _
      $region12: #{tpu_custom_call.1} parent=5 // pred_fallthru
        _
      %p207 = scmp.lt.s32.totalorder %s20, 2
      // Predicated region
      $region29: #{tpu_custom_call.1} parent=5 // pred_check
        %p208 = pneg %p207
      $region30: #{tpu_custom_call.1} parent=5 // pred_check_branch
        %210 = sbr.rel (%p208) target = $region32
      $region31: #{tpu_custom_call.1} parent=5 // pred_region
        // Predicated region
        $region33: #{tpu_custom_call.1} parent=31 // pred_check
          %p211 = pneg %p82
        $region34: #{tpu_custom_call.1} parent=31 // pred_check_branch
          %213 = sbr.rel (%p211) target = $region36
        $region35: #{tpu_custom_call.1} parent=31 // pred_region
          %s214 = sand.u32 %s72, 1
          %s215 = scalar_lea.sflag [#allocation3], %s214
          %s216 = sand.u32 %s72, 1
          %s217 = smul.addr %s216, 16
          %s218 = scalar_lea.vmem [#allocation8], %s217
          %s219 = smul.u32 2, %s20
          %s221 = ssub.s32 256, 256
          %222 = vsyncadd %s215, %s221
          %s223 = smul.addr %s219, 128
          %s224 = scalar_lea.hbm %s2, %s223
          %s225 = sshll.u32 %s218, 4
          %s226 = int_to_ptr.vmem [resolvable:$true] %s225
          %231 = dma.hbm_to_vmem [thread:$0]  %s224, 256, %s226, %s215, 128, 128, 8
        $region36: #{tpu_custom_call.1} parent=31 // pred_fallthru
          _
      $region32: #{tpu_custom_call.1} parent=5 // pred_fallthru
        _
      %p232 = scmp.le.s32.totalorder 1, %s20
      %p233 = scmp.lt.s32.totalorder %s20, 3
      %p234 = pnand %p232, %p233
      %p235 = pneg %p234
      // Predicated region
      $region37: #{tpu_custom_call.1} parent=5 // pred_check
        _
      $region38: #{tpu_custom_call.1} parent=5 // pred_check_branch
        %237 = sbr.rel (%p234) target = $region40
      $region39: #{tpu_custom_call.1} parent=5 // pred_region
        %s238 = ssub.s32 %s20, 1
        // Predicated region
        $region41: #{tpu_custom_call.1} parent=39 // pred_check
          %p239 = pneg %p41
        $region42: #{tpu_custom_call.1} parent=39 // pred_check_branch
          %241 = sbr.rel (%p239) target = $region44
        $region43: #{tpu_custom_call.1} parent=39 // pred_region
          %242 = dma.done [#allocation5], 16
        $region44: #{tpu_custom_call.1} parent=39 // pred_fallthru
          _
        // Predicated region
        $region45: #{tpu_custom_call.1} parent=39 // pred_check
          %p243 = pneg %p62
        $region46: #{tpu_custom_call.1} parent=39 // pred_check_branch
          %245 = sbr.rel (%p243) target = $region48
        $region47: #{tpu_custom_call.1} parent=39 // pred_region
          %246 = dma.done [#allocation6], 16
        $region48: #{tpu_custom_call.1} parent=39 // pred_fallthru
          _
        %s247 = sand.u32 %s75, 1
        %s248 = scalar_lea.sflag [#allocation3], %s247
        %s249 = sand.u32 %s75, 1
        %s250 = smul.addr %s249, 16
        %s251 = scalar_lea.vmem [#allocation8], %s250
        // Predicated region
        $region49: #{tpu_custom_call.1} parent=39 // pred_check
          %p252 = pneg %p88
        $region50: #{tpu_custom_call.1} parent=39 // pred_check_branch
          %254 = sbr.rel (%p252) target = $region52
        $region51: #{tpu_custom_call.1} parent=39 // pred_region
          %255 = dma.done %s248, 256
        $region52: #{tpu_custom_call.1} parent=39 // pred_fallthru
          _
        // Predicated region
        $region53: #{tpu_custom_call.1} parent=39 // pred_check
          %p256 = pneg %p109
        $region54: #{tpu_custom_call.1} parent=39 // pred_check_branch
          %258 = sbr.rel (%p256) target = $region56
        $region55: #{tpu_custom_call.1} parent=39 // pred_region
          %259 = dma.done [#allocation10], 16384
        $region56: #{tpu_custom_call.1} parent=39 // pred_fallthru
          _
        %260 = sfence
        %p261 = pneg %p41
        %p262 = pneg %p38
        %p263 = pneg %p62
        %p264 = pneg %p59
        %s265 = sand.u32 %s75, 1
        %s266 = scalar_lea.sflag [#allocation3], %s265
        %s267 = sand.u32 %s75, 1
        %s268 = smul.addr %s267, 16
        %s269 = scalar_lea.vmem [#allocation8], %s268
        %p270 = pneg %p88
        %p271 = pneg %p85
        %p272 = pneg %p109
        %p273 = pneg %p106
        %p274 = pneg %p130
        %p275 = pneg %p127
        %p276 = pneg %p156
        %p277 = pneg %p153
        %s278 = sand.u32 %s143, 1
        %s279 = scalar_lea.sflag [#allocation4], %s278
        %s280 = sand.u32 %s143, 1
        %s281 = smul.addr %s280, 16
        %s282 = scalar_lea.vmem [#allocation11], %s281
        %s283 = smul.u32 2, %s25
        %s284 = smul.u32 2, %s25
        %v285 = vld [vmem:[%s251] sm:$0xff]
        %v286 = vld [vmem:[%s251 + $0x8] sm:$0xff]
        %v287 = vmul.f32 %v285, %v285
        %v288 = vmul.f32 %v286, %v286
        %289 = vadd.xlane.f32.xlu0 %v287
        %v290 = vpop.xlane.xlu0 %289
        %291 = vadd.xlane.f32.xlu0 %v288
        %v292 = vpop.xlane.xlu0 %291
        %v293 = vrcp.pop 128.0
        %v294 = vmul.f32 %v290, %v293
        %v295 = vmul.f32 %v292, %v293
        %v296 = vadd.f32 %v294, 1e-08
        %v297 = vadd.f32 %v295, 1e-08
        %v298 = vrsqrt.pop %v296
        %v299 = vrsqrt.pop %v297
        %v300 = vmul.f32 %v285, %v298
        %v301 = vmul.f32 %v286, %v299
        %s302 = sld [smem:[#allocation2]]
        %v303 = vstv %s302
        %v304 = vmul.f32 %v300, %v303
        %v305 = vmul.f32 %v301, %v303
        %v306 = vld [vmem:[#allocation9] sm:$0xff]
        %v307 = vld [vmem:[#allocation9 + $0x8] sm:$0xff]
        %v308 = vld [vmem:[#allocation9 + $0x10] sm:$0xff]
        %v309 = vld [vmem:[#allocation9 + $0x18] sm:$0xff]
        %v310 = vld [vmem:[#allocation9 + $0x20] sm:$0xff]
        %v311 = vld [vmem:[#allocation9 + $0x28] sm:$0xff]
        %v312 = vld [vmem:[#allocation9 + $0x30] sm:$0xff]
        %v313 = vld [vmem:[#allocation9 + $0x38] sm:$0xff]
        %v314 = vld [vmem:[#allocation9 + $0x40] sm:$0xff]
        %v315 = vld [vmem:[#allocation9 + $0x48] sm:$0xff]
        %v316 = vld [vmem:[#allocation9 + $0x50] sm:$0xff]
        %v317 = vld [vmem:[#allocation9 + $0x58] sm:$0xff]
        %v318 = vld [vmem:[#allocation9 + $0x60] sm:$0xff]
        %v319 = vld [vmem:[#allocation9 + $0x68] sm:$0xff]
        %v320 = vld [vmem:[#allocation9 + $0x70] sm:$0xff]
        %v321 = vld [vmem:[#allocation9 + $0x78] sm:$0xff]
        %v322 = vld [vmem:[%s4] sm:$0x1]
        %s323 = sld [smem:[#allocation7]]
        %v324 = vstv %s323
        %v325 = vmul.f32 %v322, %v324
        %v327 = vlaneseq
        %v328 = vshrl.u32 %v327, 7
        %v329 = vsub.s32 0, %v328
        %v330 = vrot.slane %v325, %v329
        %332 = vmatprep.subr.mxu0 0.0
        %333 = vmatpush1.msra.mxu0 %v306
        %334 = vmatprep.subr.mxu0 0.0
        %335 = vmatpush1.msra.mxu0 %v307
        %336 = vmatprep.subr.mxu0 0.0
        %337 = vmatpush1.msra.mxu0 %v308
        %338 = vmatprep.subr.mxu0 0.0
        %339 = vmatpush1.msra.mxu0 %v309
        %340 = vmatprep.subr.mxu0 0.0
        %341 = vmatpush1.msra.mxu0 %v310
        %342 = vmatprep.subr.mxu0 0.0
        %343 = vmatpush1.msra.mxu0 %v311
        %344 = vmatprep.subr.mxu0 0.0
        %345 = vmatpush1.msra.mxu0 %v312
        %346 = vmatprep.subr.mxu0 0.0
        %347 = vmatpush1.msra.mxu0 %v313
        %348 = vmatprep.subr.mxu0 0.0
        %349 = vmatpush1.msra.mxu0 %v314
        %350 = vmatprep.subr.mxu0 0.0
        %351 = vmatpush1.msra.mxu0 %v315
        %352 = vmatprep.subr.mxu0 0.0
        %353 = vmatpush1.msra.mxu0 %v316
        %354 = vmatprep.subr.mxu0 0.0
        %355 = vmatpush1.msra.mxu0 %v317
        %356 = vmatprep.subr.mxu0 0.0
        %357 = vmatpush1.msra.mxu0 %v318
        %358 = vmatprep.subr.mxu0 0.0
        %359 = vmatpush1.msra.mxu0 %v319
        %360 = vmatprep.subr.mxu0 0.0
        %361 = vmatpush1.msra.mxu0 %v320
        %362 = vmatprep.subr.mxu0 0.0
        %363 = vmatpush1.msra.mxu0 %v321
        %364 = vmatprep.subr.mxu0 0.0
        %365 = vmatpush1.msra.mxu0 0.0
        %366 = vmatprep.subr.mxu0 0.0
        %367 = vmatpush1.msra.mxu0 0.0
        %368 = vmatprep.subr.mxu0 0.0
        %369 = vmatpush1.msra.mxu0 0.0
        %370 = vmatprep.subr.mxu0 0.0
        %371 = vmatpush1.msra.mxu0 0.0
        %372 = vmatprep.subr.mxu0 0.0
        %373 = vmatpush1.msra.mxu0 0.0
        %374 = vmatprep.subr.mxu0 0.0
        %375 = vmatpush1.msra.mxu0 0.0
        %376 = vmatprep.subr.mxu0 0.0
        %377 = vmatpush1.msra.mxu0 0.0
        %378 = vmatprep.subr.mxu0 0.0
        %379 = vmatpush1.msra.mxu0 0.0
        %380 = vmatprep.subr.mxu0 0.0
        %381 = vmatpush1.msra.mxu0 0.0
        %382 = vmatprep.subr.mxu0 0.0
        %383 = vmatpush1.msra.mxu0 0.0
        %384 = vmatprep.subr.mxu0 0.0
        %385 = vmatpush1.msra.mxu0 0.0
        %386 = vmatprep.subr.mxu0 0.0
        %387 = vmatpush1.msra.mxu0 0.0
        %388 = vmatprep.subr.mxu0 0.0
        %389 = vmatpush1.msra.mxu0 0.0
        %390 = vmatprep.subr.mxu0 0.0
        %391 = vmatpush1.msra.mxu0 0.0
        %392 = vmatprep.subr.mxu0 0.0
        %393 = vmatpush1.msra.mxu0 0.0
        %394 = vmatprep.subr.mxu0 0.0
        %395 = vmatpush1.msra.mxu0 0.0
        %396 = vmatprep.mubr.f32.mxu0 0.0
        %397 = vmatmul.mubr.f32.gmra.mrb[0].mxu0 %v304
        %v398 = vpop.f32.mrb[0].mxu0
        %v399 = vadd.f32 %v330, %v398
        %v400 = vpop.f32.mrb[0].mxu0
        %401 = vmatprep.mubr.f32.mxu0 0.0
        %402 = vmatmul.mubr.f32.gmra.mrb[0].mxu0 %v305
        %v403 = vpop.f32.mrb[0].mxu0
        %v404 = vadd.f32 %v330, %v403
        %v405 = vpop.f32.mrb[0].mxu0
        %406 = vdwg.mxu0
        %v407 = vmul.f32 %v399, 0.2
        %v408 = vmul.f32 %v404, 0.2
        %v409 = vmax.f32 %v399, %v407
        %v410 = vmax.f32 %v404, %v408
        %s411 = sld [smem:[#allocation2 + $0x1]]
        %v412 = vstv %s411
        %v413 = vmul.f32 %v409, %v412
        %v414 = vmul.f32 %v410, %v412
        %s415 = scalar_lea.vmem [#allocation9], 128
        %v416 = vld [vmem:[%s415] sm:$0xff]
        %v417 = vld [vmem:[%s415 + $0x8] sm:$0xff]
        %v418 = vld [vmem:[%s415 + $0x10] sm:$0xff]
        %v419 = vld [vmem:[%s415 + $0x18] sm:$0xff]
        %v420 = vld [vmem:[%s415 + $0x20] sm:$0xff]
        %v421 = vld [vmem:[%s415 + $0x28] sm:$0xff]
        %v422 = vld [vmem:[%s415 + $0x30] sm:$0xff]
        %v423 = vld [vmem:[%s415 + $0x38] sm:$0xff]
        %v424 = vld [vmem:[%s415 + $0x40] sm:$0xff]
        %v425 = vld [vmem:[%s415 + $0x48] sm:$0xff]
        %v426 = vld [vmem:[%s415 + $0x50] sm:$0xff]
        %v427 = vld [vmem:[%s415 + $0x58] sm:$0xff]
        %v428 = vld [vmem:[%s415 + $0x60] sm:$0xff]
        %v429 = vld [vmem:[%s415 + $0x68] sm:$0xff]
        %v430 = vld [vmem:[%s415 + $0x70] sm:$0xff]
        %v431 = vld [vmem:[%s415 + $0x78] sm:$0xff]
        %s432 = scalar_lea.vmem %s4, 1
        %v433 = vld [vmem:[%s432] sm:$0x1]
        %s434 = sld [smem:[#allocation7 + $0x1]]
        %v435 = vstv %s434
        %v436 = vmul.f32 %v433, %v435
        %v438 = vlaneseq
        %v439 = vshrl.u32 %v438, 7
        %v440 = vsub.s32 0, %v439
        %v441 = vrot.slane %v436, %v440
        %443 = vmatprep.subr.mxu0 0.0
        %444 = vmatpush1.msra.mxu0 %v416
        %445 = vmatprep.subr.mxu0 0.0
        %446 = vmatpush1.msra.mxu0 %v417
        %447 = vmatprep.subr.mxu0 0.0
        %448 = vmatpush1.msra.mxu0 %v418
        %449 = vmatprep.subr.mxu0 0.0
        %450 = vmatpush1.msra.mxu0 %v419
        %451 = vmatprep.subr.mxu0 0.0
        %452 = vmatpush1.msra.mxu0 %v420
        %453 = vmatprep.subr.mxu0 0.0
        %454 = vmatpush1.msra.mxu0 %v421
        %455 = vmatprep.subr.mxu0 0.0
        %456 = vmatpush1.msra.mxu0 %v422
        %457 = vmatprep.subr.mxu0 0.0
        %458 = vmatpush1.msra.mxu0 %v423
        %459 = vmatprep.subr.mxu0 0.0
        %460 = vmatpush1.msra.mxu0 %v424
        %461 = vmatprep.subr.mxu0 0.0
        %462 = vmatpush1.msra.mxu0 %v425
        %463 = vmatprep.subr.mxu0 0.0
        %464 = vmatpush1.msra.mxu0 %v426
        %465 = vmatprep.subr.mxu0 0.0
        %466 = vmatpush1.msra.mxu0 %v427
        %467 = vmatprep.subr.mxu0 0.0
        %468 = vmatpush1.msra.mxu0 %v428
        %469 = vmatprep.subr.mxu0 0.0
        %470 = vmatpush1.msra.mxu0 %v429
        %471 = vmatprep.subr.mxu0 0.0
        %472 = vmatpush1.msra.mxu0 %v430
        %473 = vmatprep.subr.mxu0 0.0
        %474 = vmatpush1.msra.mxu0 %v431
        %475 = vmatprep.subr.mxu0 0.0
        %476 = vmatpush1.msra.mxu0 0.0
        %477 = vmatprep.subr.mxu0 0.0
        %478 = vmatpush1.msra.mxu0 0.0
        %479 = vmatprep.subr.mxu0 0.0
        %480 = vmatpush1.msra.mxu0 0.0
        %481 = vmatprep.subr.mxu0 0.0
        %482 = vmatpush1.msra.mxu0 0.0
        %483 = vmatprep.subr.mxu0 0.0
        %484 = vmatpush1.msra.mxu0 0.0
        %485 = vmatprep.subr.mxu0 0.0
        %486 = vmatpush1.msra.mxu0 0.0
        %487 = vmatprep.subr.mxu0 0.0
        %488 = vmatpush1.msra.mxu0 0.0
        %489 = vmatprep.subr.mxu0 0.0
        %490 = vmatpush1.msra.mxu0 0.0
        %491 = vmatprep.subr.mxu0 0.0
        %492 = vmatpush1.msra.mxu0 0.0
        %493 = vmatprep.subr.mxu0 0.0
        %494 = vmatpush1.msra.mxu0 0.0
        %495 = vmatprep.subr.mxu0 0.0
        %496 = vmatpush1.msra.mxu0 0.0
        %497 = vmatprep.subr.mxu0 0.0
        %498 = vmatpush1.msra.mxu0 0.0
        %499 = vmatprep.subr.mxu0 0.0
        %500 = vmatpush1.msra.mxu0 0.0
        %501 = vmatprep.subr.mxu0 0.0
        %502 = vmatpush1.msra.mxu0 0.0
        %503 = vmatprep.subr.mxu0 0.0
        %504 = vmatpush1.msra.mxu0 0.0
        %505 = vmatprep.subr.mxu0 0.0
        %506 = vmatpush1.msra.mxu0 0.0
        %507 = vmatprep.mubr.f32.mxu0 0.0
        %508 = vmatmul.mubr.f32.gmra.mrb[0].mxu0 %v413
        %v509 = vpop.f32.mrb[0].mxu0
        %v510 = vadd.f32 %v441, %v509
        %v511 = vpop.f32.mrb[0].mxu0
        %512 = vmatprep.mubr.f32.mxu0 0.0
        %513 = vmatmul.mubr.f32.gmra.mrb[0].mxu0 %v414
        %v514 = vpop.f32.mrb[0].mxu0
        %v515 = vadd.f32 %v441, %v514
        %v516 = vpop.f32.mrb[0].mxu0
        %517 = vdwg.mxu0
        %v518 = vmul.f32 %v510, 0.2
        %v519 = vmul.f32 %v515, 0.2
        %v520 = vmax.f32 %v510, %v518
        %v521 = vmax.f32 %v515, %v519
        %s522 = sld [smem:[#allocation2 + $0x2]]
        %v523 = vstv %s522
        %v524 = vmul.f32 %v520, %v523
        %v525 = vmul.f32 %v521, %v523
        %s526 = scalar_lea.vmem [#allocation9], 256
        %v527 = vld [vmem:[%s526] sm:$0xff]
        %v528 = vld [vmem:[%s526 + $0x8] sm:$0xff]
        %v529 = vld [vmem:[%s526 + $0x10] sm:$0xff]
        %v530 = vld [vmem:[%s526 + $0x18] sm:$0xff]
        %v531 = vld [vmem:[%s526 + $0x20] sm:$0xff]
        %v532 = vld [vmem:[%s526 + $0x28] sm:$0xff]
        %v533 = vld [vmem:[%s526 + $0x30] sm:$0xff]
        %v534 = vld [vmem:[%s526 + $0x38] sm:$0xff]
        %v535 = vld [vmem:[%s526 + $0x40] sm:$0xff]
        %v536 = vld [vmem:[%s526 + $0x48] sm:$0xff]
        %v537 = vld [vmem:[%s526 + $0x50] sm:$0xff]
        %v538 = vld [vmem:[%s526 + $0x58] sm:$0xff]
        %v539 = vld [vmem:[%s526 + $0x60] sm:$0xff]
        %v540 = vld [vmem:[%s526 + $0x68] sm:$0xff]
        %v541 = vld [vmem:[%s526 + $0x70] sm:$0xff]
        %v542 = vld [vmem:[%s526 + $0x78] sm:$0xff]
        %s543 = scalar_lea.vmem %s4, 2
        %v544 = vld [vmem:[%s543] sm:$0x1]
        %s545 = sld [smem:[#allocation7 + $0x2]]
        %v546 = vstv %s545
        %v547 = vmul.f32 %v544, %v546
        %v549 = vlaneseq
        %v550 = vshrl.u32 %v549, 7
        %v551 = vsub.s32 0, %v550
        %v552 = vrot.slane %v547, %v551
        %554 = vmatprep.subr.mxu0 0.0
        %555 = vmatpush1.msra.mxu0 %v527
        %556 = vmatprep.subr.mxu0 0.0
        %557 = vmatpush1.msra.mxu0 %v528
        %558 = vmatprep.subr.mxu0 0.0
        %559 = vmatpush1.msra.mxu0 %v529
        %560 = vmatprep.subr.mxu0 0.0
        %561 = vmatpush1.msra.mxu0 %v530
        %562 = vmatprep.subr.mxu0 0.0
        %563 = vmatpush1.msra.mxu0 %v531
        %564 = vmatprep.subr.mxu0 0.0
        %565 = vmatpush1.msra.mxu0 %v532
        %566 = vmatprep.subr.mxu0 0.0
        %567 = vmatpush1.msra.mxu0 %v533
        %568 = vmatprep.subr.mxu0 0.0
        %569 = vmatpush1.msra.mxu0 %v534
        %570 = vmatprep.subr.mxu0 0.0
        %571 = vmatpush1.msra.mxu0 %v535
        %572 = vmatprep.subr.mxu0 0.0
        %573 = vmatpush1.msra.mxu0 %v536
        %574 = vmatprep.subr.mxu0 0.0
        %575 = vmatpush1.msra.mxu0 %v537
        %576 = vmatprep.subr.mxu0 0.0
        %577 = vmatpush1.msra.mxu0 %v538
        %578 = vmatprep.subr.mxu0 0.0
        %579 = vmatpush1.msra.mxu0 %v539
        %580 = vmatprep.subr.mxu0 0.0
        %581 = vmatpush1.msra.mxu0 %v540
        %582 = vmatprep.subr.mxu0 0.0
        %583 = vmatpush1.msra.mxu0 %v541
        %584 = vmatprep.subr.mxu0 0.0
        %585 = vmatpush1.msra.mxu0 %v542
        %586 = vmatprep.subr.mxu0 0.0
        %587 = vmatpush1.msra.mxu0 0.0
        %588 = vmatprep.subr.mxu0 0.0
        %589 = vmatpush1.msra.mxu0 0.0
        %590 = vmatprep.subr.mxu0 0.0
        %591 = vmatpush1.msra.mxu0 0.0
        %592 = vmatprep.subr.mxu0 0.0
        %593 = vmatpush1.msra.mxu0 0.0
        %594 = vmatprep.subr.mxu0 0.0
        %595 = vmatpush1.msra.mxu0 0.0
        %596 = vmatprep.subr.mxu0 0.0
        %597 = vmatpush1.msra.mxu0 0.0
        %598 = vmatprep.subr.mxu0 0.0
        %599 = vmatpush1.msra.mxu0 0.0
        %600 = vmatprep.subr.mxu0 0.0
        %601 = vmatpush1.msra.mxu0 0.0
        %602 = vmatprep.subr.mxu0 0.0
        %603 = vmatpush1.msra.mxu0 0.0
        %604 = vmatprep.subr.mxu0 0.0
        %605 = vmatpush1.msra.mxu0 0.0
        %606 = vmatprep.subr.mxu0 0.0
        %607 = vmatpush1.msra.mxu0 0.0
        %608 = vmatprep.subr.mxu0 0.0
        %609 = vmatpush1.msra.mxu0 0.0
        %610 = vmatprep.subr.mxu0 0.0
        %611 = vmatpush1.msra.mxu0 0.0
        %612 = vmatprep.subr.mxu0 0.0
        %613 = vmatpush1.msra.mxu0 0.0
        %614 = vmatprep.subr.mxu0 0.0
        %615 = vmatpush1.msra.mxu0 0.0
        %616 = vmatprep.subr.mxu0 0.0
        %617 = vmatpush1.msra.mxu0 0.0
        %618 = vmatprep.mubr.f32.mxu0 0.0
        %619 = vmatmul.mubr.f32.gmra.mrb[0].mxu0 %v524
        %v620 = vpop.f32.mrb[0].mxu0
        %v621 = vadd.f32 %v552, %v620
        %v622 = vpop.f32.mrb[0].mxu0
        %623 = vmatprep.mubr.f32.mxu0 0.0
        %624 = vmatmul.mubr.f32.gmra.mrb[0].mxu0 %v525
        %v625 = vpop.f32.mrb[0].mxu0
        %v626 = vadd.f32 %v552, %v625
        %v627 = vpop.f32.mrb[0].mxu0
        %628 = vdwg.mxu0
        %v629 = vmul.f32 %v621, 0.2
        %v630 = vmul.f32 %v626, 0.2
        %v631 = vmax.f32 %v621, %v629
        %v632 = vmax.f32 %v626, %v630
        %s633 = sld [smem:[#allocation2 + $0x3]]
        %v634 = vstv %s633
        %v635 = vmul.f32 %v631, %v634
        %v636 = vmul.f32 %v632, %v634
        %s637 = scalar_lea.vmem [#allocation9], 384
        %v638 = vld [vmem:[%s637] sm:$0xff]
        %v639 = vld [vmem:[%s637 + $0x8] sm:$0xff]
        %v640 = vld [vmem:[%s637 + $0x10] sm:$0xff]
        %v641 = vld [vmem:[%s637 + $0x18] sm:$0xff]
        %v642 = vld [vmem:[%s637 + $0x20] sm:$0xff]
        %v643 = vld [vmem:[%s637 + $0x28] sm:$0xff]
        %v644 = vld [vmem:[%s637 + $0x30] sm:$0xff]
        %v645 = vld [vmem:[%s637 + $0x38] sm:$0xff]
        %v646 = vld [vmem:[%s637 + $0x40] sm:$0xff]
        %v647 = vld [vmem:[%s637 + $0x48] sm:$0xff]
        %v648 = vld [vmem:[%s637 + $0x50] sm:$0xff]
        %v649 = vld [vmem:[%s637 + $0x58] sm:$0xff]
        %v650 = vld [vmem:[%s637 + $0x60] sm:$0xff]
        %v651 = vld [vmem:[%s637 + $0x68] sm:$0xff]
        %v652 = vld [vmem:[%s637 + $0x70] sm:$0xff]
        %v653 = vld [vmem:[%s637 + $0x78] sm:$0xff]
        %s654 = scalar_lea.vmem %s4, 3
        %v655 = vld [vmem:[%s654] sm:$0x1]
        %s656 = sld [smem:[#allocation7 + $0x3]]
        %v657 = vstv %s656
        %v658 = vmul.f32 %v655, %v657
        %v660 = vlaneseq
        %v661 = vshrl.u32 %v660, 7
        %v662 = vsub.s32 0, %v661
        %v663 = vrot.slane %v658, %v662
        %665 = vmatprep.subr.mxu0 0.0
        %666 = vmatpush1.msra.mxu0 %v638
        %667 = vmatprep.subr.mxu0 0.0
        %668 = vmatpush1.msra.mxu0 %v639
        %669 = vmatprep.subr.mxu0 0.0
        %670 = vmatpush1.msra.mxu0 %v640
        %671 = vmatprep.subr.mxu0 0.0
        %672 = vmatpush1.msra.mxu0 %v641
        %673 = vmatprep.subr.mxu0 0.0
        %674 = vmatpush1.msra.mxu0 %v642
        %675 = vmatprep.subr.mxu0 0.0
        %676 = vmatpush1.msra.mxu0 %v643
        %677 = vmatprep.subr.mxu0 0.0
        %678 = vmatpush1.msra.mxu0 %v644
        %679 = vmatprep.subr.mxu0 0.0
        %680 = vmatpush1.msra.mxu0 %v645
        %681 = vmatprep.subr.mxu0 0.0
        %682 = vmatpush1.msra.mxu0 %v646
        %683 = vmatprep.subr.mxu0 0.0
        %684 = vmatpush1.msra.mxu0 %v647
        %685 = vmatprep.subr.mxu0 0.0
        %686 = vmatpush1.msra.mxu0 %v648
        %687 = vmatprep.subr.mxu0 0.0
        %688 = vmatpush1.msra.mxu0 %v649
        %689 = vmatprep.subr.mxu0 0.0
        %690 = vmatpush1.msra.mxu0 %v650
        %691 = vmatprep.subr.mxu0 0.0
        %692 = vmatpush1.msra.mxu0 %v651
        %693 = vmatprep.subr.mxu0 0.0
        %694 = vmatpush1.msra.mxu0 %v652
        %695 = vmatprep.subr.mxu0 0.0
        %696 = vmatpush1.msra.mxu0 %v653
        %697 = vmatprep.subr.mxu0 0.0
        %698 = vmatpush1.msra.mxu0 0.0
        %699 = vmatprep.subr.mxu0 0.0
        %700 = vmatpush1.msra.mxu0 0.0
        %701 = vmatprep.subr.mxu0 0.0
        %702 = vmatpush1.msra.mxu0 0.0
        %703 = vmatprep.subr.mxu0 0.0
        %704 = vmatpush1.msra.mxu0 0.0
        %705 = vmatprep.subr.mxu0 0.0
        %706 = vmatpush1.msra.mxu0 0.0
        %707 = vmatprep.subr.mxu0 0.0
        %708 = vmatpush1.msra.mxu0 0.0
        %709 = vmatprep.subr.mxu0 0.0
        %710 = vmatpush1.msra.mxu0 0.0
        %711 = vmatprep.subr.mxu0 0.0
        %712 = vmatpush1.msra.mxu0 0.0
        %713 = vmatprep.subr.mxu0 0.0
        %714 = vmatpush1.msra.mxu0 0.0
        %715 = vmatprep.subr.mxu0 0.0
        %716 = vmatpush1.msra.mxu0 0.0
        %717 = vmatprep.subr.mxu0 0.0
        %718 = vmatpush1.msra.mxu0 0.0
        %719 = vmatprep.subr.mxu0 0.0
        %720 = vmatpush1.msra.mxu0 0.0
        %721 = vmatprep.subr.mxu0 0.0
        %722 = vmatpush1.msra.mxu0 0.0
        %723 = vmatprep.subr.mxu0 0.0
        %724 = vmatpush1.msra.mxu0 0.0
        %725 = vmatprep.subr.mxu0 0.0
        %726 = vmatpush1.msra.mxu0 0.0
        %727 = vmatprep.subr.mxu0 0.0
        %728 = vmatpush1.msra.mxu0 0.0
        %729 = vmatprep.mubr.f32.mxu0 0.0
        %730 = vmatmul.mubr.f32.gmra.mrb[0].mxu0 %v635
        %v731 = vpop.f32.mrb[0].mxu0
        %v732 = vadd.f32 %v663, %v731
        %v733 = vpop.f32.mrb[0].mxu0
        %734 = vmatprep.mubr.f32.mxu0 0.0
        %735 = vmatmul.mubr.f32.gmra.mrb[0].mxu0 %v636
        %v736 = vpop.f32.mrb[0].mxu0
        %v737 = vadd.f32 %v663, %v736
        %v738 = vpop.f32.mrb[0].mxu0
        %739 = vdwg.mxu0
        %v740 = vmul.f32 %v732, 0.2
        %v741 = vmul.f32 %v737, 0.2
        %v742 = vmax.f32 %v732, %v740
        %v743 = vmax.f32 %v737, %v741
        %s744 = sld [smem:[#allocation2 + $0x4]]
        %v745 = vstv %s744
        %v746 = vmul.f32 %v742, %v745
        %v747 = vmul.f32 %v743, %v745
        %s748 = scalar_lea.vmem [#allocation9], 512
        %v749 = vld [vmem:[%s748] sm:$0xff]
        %v750 = vld [vmem:[%s748 + $0x8] sm:$0xff]
        %v751 = vld [vmem:[%s748 + $0x10] sm:$0xff]
        %v752 = vld [vmem:[%s748 + $0x18] sm:$0xff]
        %v753 = vld [vmem:[%s748 + $0x20] sm:$0xff]
        %v754 = vld [vmem:[%s748 + $0x28] sm:$0xff]
        %v755 = vld [vmem:[%s748 + $0x30] sm:$0xff]
        %v756 = vld [vmem:[%s748 + $0x38] sm:$0xff]
        %v757 = vld [vmem:[%s748 + $0x40] sm:$0xff]
        %v758 = vld [vmem:[%s748 + $0x48] sm:$0xff]
        %v759 = vld [vmem:[%s748 + $0x50] sm:$0xff]
        %v760 = vld [vmem:[%s748 + $0x58] sm:$0xff]
        %v761 = vld [vmem:[%s748 + $0x60] sm:$0xff]
        %v762 = vld [vmem:[%s748 + $0x68] sm:$0xff]
        %v763 = vld [vmem:[%s748 + $0x70] sm:$0xff]
        %v764 = vld [vmem:[%s748 + $0x78] sm:$0xff]
        %s765 = scalar_lea.vmem %s4, 4
        %v766 = vld [vmem:[%s765] sm:$0x1]
        %s767 = sld [smem:[#allocation7 + $0x4]]
        %v768 = vstv %s767
        %v769 = vmul.f32 %v766, %v768
        %v771 = vlaneseq
        %v772 = vshrl.u32 %v771, 7
        %v773 = vsub.s32 0, %v772
        %v774 = vrot.slane %v769, %v773
        %776 = vmatprep.subr.mxu0 0.0
        %777 = vmatpush1.msra.mxu0 %v749
        %778 = vmatprep.subr.mxu0 0.0
        %779 = vmatpush1.msra.mxu0 %v750
        %780 = vmatprep.subr.mxu0 0.0
        %781 = vmatpush1.msra.mxu0 %v751
        %782 = vmatprep.subr.mxu0 0.0
        %783 = vmatpush1.msra.mxu0 %v752
        %784 = vmatprep.subr.mxu0 0.0
        %785 = vmatpush1.msra.mxu0 %v753
        %786 = vmatprep.subr.mxu0 0.0
        %787 = vmatpush1.msra.mxu0 %v754
        %788 = vmatprep.subr.mxu0 0.0
        %789 = vmatpush1.msra.mxu0 %v755
        %790 = vmatprep.subr.mxu0 0.0
        %791 = vmatpush1.msra.mxu0 %v756
        %792 = vmatprep.subr.mxu0 0.0
        %793 = vmatpush1.msra.mxu0 %v757
        %794 = vmatprep.subr.mxu0 0.0
        %795 = vmatpush1.msra.mxu0 %v758
        %796 = vmatprep.subr.mxu0 0.0
        %797 = vmatpush1.msra.mxu0 %v759
        %798 = vmatprep.subr.mxu0 0.0
        %799 = vmatpush1.msra.mxu0 %v760
        %800 = vmatprep.subr.mxu0 0.0
        %801 = vmatpush1.msra.mxu0 %v761
        %802 = vmatprep.subr.mxu0 0.0
        %803 = vmatpush1.msra.mxu0 %v762
        %804 = vmatprep.subr.mxu0 0.0
        %805 = vmatpush1.msra.mxu0 %v763
        %806 = vmatprep.subr.mxu0 0.0
        %807 = vmatpush1.msra.mxu0 %v764
        %808 = vmatprep.subr.mxu0 0.0
        %809 = vmatpush1.msra.mxu0 0.0
        %810 = vmatprep.subr.mxu0 0.0
        %811 = vmatpush1.msra.mxu0 0.0
        %812 = vmatprep.subr.mxu0 0.0
        %813 = vmatpush1.msra.mxu0 0.0
        %814 = vmatprep.subr.mxu0 0.0
        %815 = vmatpush1.msra.mxu0 0.0
        %816 = vmatprep.subr.mxu0 0.0
        %817 = vmatpush1.msra.mxu0 0.0
        %818 = vmatprep.subr.mxu0 0.0
        %819 = vmatpush1.msra.mxu0 0.0
        %820 = vmatprep.subr.mxu0 0.0
        %821 = vmatpush1.msra.mxu0 0.0
        %822 = vmatprep.subr.mxu0 0.0
        %823 = vmatpush1.msra.mxu0 0.0
        %824 = vmatprep.subr.mxu0 0.0
        %825 = vmatpush1.msra.mxu0 0.0
        %826 = vmatprep.subr.mxu0 0.0
        %827 = vmatpush1.msra.mxu0 0.0
        %828 = vmatprep.subr.mxu0 0.0
        %829 = vmatpush1.msra.mxu0 0.0
        %830 = vmatprep.subr.mxu0 0.0
        %831 = vmatpush1.msra.mxu0 0.0
        %832 = vmatprep.subr.mxu0 0.0
        %833 = vmatpush1.msra.mxu0 0.0
        %834 = vmatprep.subr.mxu0 0.0
        %835 = vmatpush1.msra.mxu0 0.0
        %836 = vmatprep.subr.mxu0 0.0
        %837 = vmatpush1.msra.mxu0 0.0
        %838 = vmatprep.subr.mxu0 0.0
        %839 = vmatpush1.msra.mxu0 0.0
        %840 = vmatprep.mubr.f32.mxu0 0.0
        %841 = vmatmul.mubr.f32.gmra.mrb[0].mxu0 %v746
        %v842 = vpop.f32.mrb[0].mxu0
        %v843 = vadd.f32 %v774, %v842
        %v844 = vpop.f32.mrb[0].mxu0
        %845 = vmatprep.mubr.f32.mxu0 0.0
        %846 = vmatmul.mubr.f32.gmra.mrb[0].mxu0 %v747
        %v847 = vpop.f32.mrb[0].mxu0
        %v848 = vadd.f32 %v774, %v847
        %v849 = vpop.f32.mrb[0].mxu0
        %850 = vdwg.mxu0
        %v851 = vmul.f32 %v843, 0.2
        %v852 = vmul.f32 %v848, 0.2
        %v853 = vmax.f32 %v843, %v851
        %v854 = vmax.f32 %v848, %v852
        %s855 = sld [smem:[#allocation2 + $0x5]]
        %v856 = vstv %s855
        %v857 = vmul.f32 %v853, %v856
        %v858 = vmul.f32 %v854, %v856
        %s859 = scalar_lea.vmem [#allocation9], 640
        %v860 = vld [vmem:[%s859] sm:$0xff]
        %v861 = vld [vmem:[%s859 + $0x8] sm:$0xff]
        %v862 = vld [vmem:[%s859 + $0x10] sm:$0xff]
        %v863 = vld [vmem:[%s859 + $0x18] sm:$0xff]
        %v864 = vld [vmem:[%s859 + $0x20] sm:$0xff]
        %v865 = vld [vmem:[%s859 + $0x28] sm:$0xff]
        %v866 = vld [vmem:[%s859 + $0x30] sm:$0xff]
        %v867 = vld [vmem:[%s859 + $0x38] sm:$0xff]
        %v868 = vld [vmem:[%s859 + $0x40] sm:$0xff]
        %v869 = vld [vmem:[%s859 + $0x48] sm:$0xff]
        %v870 = vld [vmem:[%s859 + $0x50] sm:$0xff]
        %v871 = vld [vmem:[%s859 + $0x58] sm:$0xff]
        %v872 = vld [vmem:[%s859 + $0x60] sm:$0xff]
        %v873 = vld [vmem:[%s859 + $0x68] sm:$0xff]
        %v874 = vld [vmem:[%s859 + $0x70] sm:$0xff]
        %v875 = vld [vmem:[%s859 + $0x78] sm:$0xff]
        %s876 = scalar_lea.vmem %s4, 5
        %v877 = vld [vmem:[%s876] sm:$0x1]
        %s878 = sld [smem:[#allocation7 + $0x5]]
        %v879 = vstv %s878
        %v880 = vmul.f32 %v877, %v879
        %v882 = vlaneseq
        %v883 = vshrl.u32 %v882, 7
        %v884 = vsub.s32 0, %v883
        %v885 = vrot.slane %v880, %v884
        %887 = vmatprep.subr.mxu0 0.0
        %888 = vmatpush1.msra.mxu0 %v860
        %889 = vmatprep.subr.mxu0 0.0
        %890 = vmatpush1.msra.mxu0 %v861
        %891 = vmatprep.subr.mxu0 0.0
        %892 = vmatpush1.msra.mxu0 %v862
        %893 = vmatprep.subr.mxu0 0.0
        %894 = vmatpush1.msra.mxu0 %v863
        %895 = vmatprep.subr.mxu0 0.0
        %896 = vmatpush1.msra.mxu0 %v864
        %897 = vmatprep.subr.mxu0 0.0
        %898 = vmatpush1.msra.mxu0 %v865
        %899 = vmatprep.subr.mxu0 0.0
        %900 = vmatpush1.msra.mxu0 %v866
        %901 = vmatprep.subr.mxu0 0.0
        %902 = vmatpush1.msra.mxu0 %v867
        %903 = vmatprep.subr.mxu0 0.0
        %904 = vmatpush1.msra.mxu0 %v868
        %905 = vmatprep.subr.mxu0 0.0
        %906 = vmatpush1.msra.mxu0 %v869
        %907 = vmatprep.subr.mxu0 0.0
        %908 = vmatpush1.msra.mxu0 %v870
        %909 = vmatprep.subr.mxu0 0.0
        %910 = vmatpush1.msra.mxu0 %v871
        %911 = vmatprep.subr.mxu0 0.0
        %912 = vmatpush1.msra.mxu0 %v872
        %913 = vmatprep.subr.mxu0 0.0
        %914 = vmatpush1.msra.mxu0 %v873
        %915 = vmatprep.subr.mxu0 0.0
        %916 = vmatpush1.msra.mxu0 %v874
        %917 = vmatprep.subr.mxu0 0.0
        %918 = vmatpush1.msra.mxu0 %v875
        %919 = vmatprep.subr.mxu0 0.0
        %920 = vmatpush1.msra.mxu0 0.0
        %921 = vmatprep.subr.mxu0 0.0
        %922 = vmatpush1.msra.mxu0 0.0
        %923 = vmatprep.subr.mxu0 0.0
        %924 = vmatpush1.msra.mxu0 0.0
        %925 = vmatprep.subr.mxu0 0.0
        %926 = vmatpush1.msra.mxu0 0.0
        %927 = vmatprep.subr.mxu0 0.0
        %928 = vmatpush1.msra.mxu0 0.0
        %929 = vmatprep.subr.mxu0 0.0
        %930 = vmatpush1.msra.mxu0 0.0
        %931 = vmatprep.subr.mxu0 0.0
        %932 = vmatpush1.msra.mxu0 0.0
        %933 = vmatprep.subr.mxu0 0.0
        %934 = vmatpush1.msra.mxu0 0.0
        %935 = vmatprep.subr.mxu0 0.0
        %936 = vmatpush1.msra.mxu0 0.0
        %937 = vmatprep.subr.mxu0 0.0
        %938 = vmatpush1.msra.mxu0 0.0
        %939 = vmatprep.subr.mxu0 0.0
        %940 = vmatpush1.msra.mxu0 0.0
        %941 = vmatprep.subr.mxu0 0.0
        %942 = vmatpush1.msra.mxu0 0.0
        %943 = vmatprep.subr.mxu0 0.0
        %944 = vmatpush1.msra.mxu0 0.0
        %945 = vmatprep.subr.mxu0 0.0
        %946 = vmatpush1.msra.mxu0 0.0
        %947 = vmatprep.subr.mxu0 0.0
        %948 = vmatpush1.msra.mxu0 0.0
        %949 = vmatprep.subr.mxu0 0.0
        %950 = vmatpush1.msra.mxu0 0.0
        %951 = vmatprep.mubr.f32.mxu0 0.0
        %952 = vmatmul.mubr.f32.gmra.mrb[0].mxu0 %v857
        %v953 = vpop.f32.mrb[0].mxu0
        %v954 = vadd.f32 %v885, %v953
        %v955 = vpop.f32.mrb[0].mxu0
        %956 = vmatprep.mubr.f32.mxu0 0.0
        %957 = vmatmul.mubr.f32.gmra.mrb[0].mxu0 %v858
        %v958 = vpop.f32.mrb[0].mxu0
        %v959 = vadd.f32 %v885, %v958
        %v960 = vpop.f32.mrb[0].mxu0
        %961 = vdwg.mxu0
        %v962 = vmul.f32 %v954, 0.2
        %v963 = vmul.f32 %v959, 0.2
        %v964 = vmax.f32 %v954, %v962
        %v965 = vmax.f32 %v959, %v963
        %s966 = sld [smem:[#allocation2 + $0x6]]
        %v967 = vstv %s966
        %v968 = vmul.f32 %v964, %v967
        %v969 = vmul.f32 %v965, %v967
        %s970 = scalar_lea.vmem [#allocation9], 768
        %v971 = vld [vmem:[%s970] sm:$0xff]
        %v972 = vld [vmem:[%s970 + $0x8] sm:$0xff]
        %v973 = vld [vmem:[%s970 + $0x10] sm:$0xff]
        %v974 = vld [vmem:[%s970 + $0x18] sm:$0xff]
        %v975 = vld [vmem:[%s970 + $0x20] sm:$0xff]
        %v976 = vld [vmem:[%s970 + $0x28] sm:$0xff]
        %v977 = vld [vmem:[%s970 + $0x30] sm:$0xff]
        %v978 = vld [vmem:[%s970 + $0x38] sm:$0xff]
        %v979 = vld [vmem:[%s970 + $0x40] sm:$0xff]
        %v980 = vld [vmem:[%s970 + $0x48] sm:$0xff]
        %v981 = vld [vmem:[%s970 + $0x50] sm:$0xff]
        %v982 = vld [vmem:[%s970 + $0x58] sm:$0xff]
        %v983 = vld [vmem:[%s970 + $0x60] sm:$0xff]
        %v984 = vld [vmem:[%s970 + $0x68] sm:$0xff]
        %v985 = vld [vmem:[%s970 + $0x70] sm:$0xff]
        %v986 = vld [vmem:[%s970 + $0x78] sm:$0xff]
        %s987 = scalar_lea.vmem %s4, 6
        %v988 = vld [vmem:[%s987] sm:$0x1]
        %s989 = sld [smem:[#allocation7 + $0x6]]
        %v990 = vstv %s989
        %v991 = vmul.f32 %v988, %v990
        %v993 = vlaneseq
        %v994 = vshrl.u32 %v993, 7
        %v995 = vsub.s32 0, %v994
        %v996 = vrot.slane %v991, %v995
        %998 = vmatprep.subr.mxu0 0.0
        %999 = vmatpush1.msra.mxu0 %v971
        %1000 = vmatprep.subr.mxu0 0.0
        %1001 = vmatpush1.msra.mxu0 %v972
        %1002 = vmatprep.subr.mxu0 0.0
        %1003 = vmatpush1.msra.mxu0 %v973
        %1004 = vmatprep.subr.mxu0 0.0
        %1005 = vmatpush1.msra.mxu0 %v974
        %1006 = vmatprep.subr.mxu0 0.0
        %1007 = vmatpush1.msra.mxu0 %v975
        %1008 = vmatprep.subr.mxu0 0.0
        %1009 = vmatpush1.msra.mxu0 %v976
        %1010 = vmatprep.subr.mxu0 0.0
        %1011 = vmatpush1.msra.mxu0 %v977
        %1012 = vmatprep.subr.mxu0 0.0
        %1013 = vmatpush1.msra.mxu0 %v978
        %1014 = vmatprep.subr.mxu0 0.0
        %1015 = vmatpush1.msra.mxu0 %v979
        %1016 = vmatprep.subr.mxu0 0.0
        %1017 = vmatpush1.msra.mxu0 %v980
        %1018 = vmatprep.subr.mxu0 0.0
        %1019 = vmatpush1.msra.mxu0 %v981
        %1020 = vmatprep.subr.mxu0 0.0
        %1021 = vmatpush1.msra.mxu0 %v982
        %1022 = vmatprep.subr.mxu0 0.0
        %1023 = vmatpush1.msra.mxu0 %v983
        %1024 = vmatprep.subr.mxu0 0.0
        %1025 = vmatpush1.msra.mxu0 %v984
        %1026 = vmatprep.subr.mxu0 0.0
        %1027 = vmatpush1.msra.mxu0 %v985
        %1028 = vmatprep.subr.mxu0 0.0
        %1029 = vmatpush1.msra.mxu0 %v986
        %1030 = vmatprep.subr.mxu0 0.0
        %1031 = vmatpush1.msra.mxu0 0.0
        %1032 = vmatprep.subr.mxu0 0.0
        %1033 = vmatpush1.msra.mxu0 0.0
        %1034 = vmatprep.subr.mxu0 0.0
        %1035 = vmatpush1.msra.mxu0 0.0
        %1036 = vmatprep.subr.mxu0 0.0
        %1037 = vmatpush1.msra.mxu0 0.0
        %1038 = vmatprep.subr.mxu0 0.0
        %1039 = vmatpush1.msra.mxu0 0.0
        %1040 = vmatprep.subr.mxu0 0.0
        %1041 = vmatpush1.msra.mxu0 0.0
        %1042 = vmatprep.subr.mxu0 0.0
        %1043 = vmatpush1.msra.mxu0 0.0
        %1044 = vmatprep.subr.mxu0 0.0
        %1045 = vmatpush1.msra.mxu0 0.0
        %1046 = vmatprep.subr.mxu0 0.0
        %1047 = vmatpush1.msra.mxu0 0.0
        %1048 = vmatprep.subr.mxu0 0.0
        %1049 = vmatpush1.msra.mxu0 0.0
        %1050 = vmatprep.subr.mxu0 0.0
        %1051 = vmatpush1.msra.mxu0 0.0
        %1052 = vmatprep.subr.mxu0 0.0
        %1053 = vmatpush1.msra.mxu0 0.0
        %1054 = vmatprep.subr.mxu0 0.0
        %1055 = vmatpush1.msra.mxu0 0.0
        %1056 = vmatprep.subr.mxu0 0.0
        %1057 = vmatpush1.msra.mxu0 0.0
        %1058 = vmatprep.subr.mxu0 0.0
        %1059 = vmatpush1.msra.mxu0 0.0
        %1060 = vmatprep.subr.mxu0 0.0
        %1061 = vmatpush1.msra.mxu0 0.0
        %1062 = vmatprep.mubr.f32.mxu0 0.0
        %1063 = vmatmul.mubr.f32.gmra.mrb[0].mxu0 %v968
        %v1064 = vpop.f32.mrb[0].mxu0
        %v1065 = vadd.f32 %v996, %v1064
        %v1066 = vpop.f32.mrb[0].mxu0
        %1067 = vmatprep.mubr.f32.mxu0 0.0
        %1068 = vmatmul.mubr.f32.gmra.mrb[0].mxu0 %v969
        %v1069 = vpop.f32.mrb[0].mxu0
        %v1070 = vadd.f32 %v996, %v1069
        %v1071 = vpop.f32.mrb[0].mxu0
        %1072 = vdwg.mxu0
        %v1073 = vmul.f32 %v1065, 0.2
        %v1074 = vmul.f32 %v1070, 0.2
        %v1075 = vmax.f32 %v1065, %v1073
        %v1076 = vmax.f32 %v1070, %v1074
        %s1077 = sld [smem:[#allocation2 + $0x7]]
        %v1078 = vstv %s1077
        %v1079 = vmul.f32 %v1075, %v1078
        %v1080 = vmul.f32 %v1076, %v1078
        %s1081 = scalar_lea.vmem [#allocation9], 896
        %v1082 = vld [vmem:[%s1081] sm:$0xff]
        %v1083 = vld [vmem:[%s1081 + $0x8] sm:$0xff]
        %v1084 = vld [vmem:[%s1081 + $0x10] sm:$0xff]
        %v1085 = vld [vmem:[%s1081 + $0x18] sm:$0xff]
        %v1086 = vld [vmem:[%s1081 + $0x20] sm:$0xff]
        %v1087 = vld [vmem:[%s1081 + $0x28] sm:$0xff]
        %v1088 = vld [vmem:[%s1081 + $0x30] sm:$0xff]
        %v1089 = vld [vmem:[%s1081 + $0x38] sm:$0xff]
        %v1090 = vld [vmem:[%s1081 + $0x40] sm:$0xff]
        %v1091 = vld [vmem:[%s1081 + $0x48] sm:$0xff]
        %v1092 = vld [vmem:[%s1081 + $0x50] sm:$0xff]
        %v1093 = vld [vmem:[%s1081 + $0x58] sm:$0xff]
        %v1094 = vld [vmem:[%s1081 + $0x60] sm:$0xff]
        %v1095 = vld [vmem:[%s1081 + $0x68] sm:$0xff]
        %v1096 = vld [vmem:[%s1081 + $0x70] sm:$0xff]
        %v1097 = vld [vmem:[%s1081 + $0x78] sm:$0xff]
        %s1098 = scalar_lea.vmem %s4, 7
        %v1099 = vld [vmem:[%s1098] sm:$0x1]
        %s1100 = sld [smem:[#allocation7 + $0x7]]
        %v1101 = vstv %s1100
        %v1102 = vmul.f32 %v1099, %v1101
        %v1104 = vlaneseq
        %v1105 = vshrl.u32 %v1104, 7
        %v1106 = vsub.s32 0, %v1105
        %v1107 = vrot.slane %v1102, %v1106
        %1109 = vmatprep.subr.mxu0 0.0
        %1110 = vmatpush1.msra.mxu0 %v1082
        %1111 = vmatprep.subr.mxu0 0.0
        %1112 = vmatpush1.msra.mxu0 %v1083
        %1113 = vmatprep.subr.mxu0 0.0
        %1114 = vmatpush1.msra.mxu0 %v1084
        %1115 = vmatprep.subr.mxu0 0.0
        %1116 = vmatpush1.msra.mxu0 %v1085
        %1117 = vmatprep.subr.mxu0 0.0
        %1118 = vmatpush1.msra.mxu0 %v1086
        %1119 = vmatprep.subr.mxu0 0.0
        %1120 = vmatpush1.msra.mxu0 %v1087
        %1121 = vmatprep.subr.mxu0 0.0
        %1122 = vmatpush1.msra.mxu0 %v1088
        %1123 = vmatprep.subr.mxu0 0.0
        %1124 = vmatpush1.msra.mxu0 %v1089
        %1125 = vmatprep.subr.mxu0 0.0
        %1126 = vmatpush1.msra.mxu0 %v1090
        %1127 = vmatprep.subr.mxu0 0.0
        %1128 = vmatpush1.msra.mxu0 %v1091
        %1129 = vmatprep.subr.mxu0 0.0
        %1130 = vmatpush1.msra.mxu0 %v1092
        %1131 = vmatprep.subr.mxu0 0.0
        %1132 = vmatpush1.msra.mxu0 %v1093
        %1133 = vmatprep.subr.mxu0 0.0
        %1134 = vmatpush1.msra.mxu0 %v1094
        %1135 = vmatprep.subr.mxu0 0.0
        %1136 = vmatpush1.msra.mxu0 %v1095
        %1137 = vmatprep.subr.mxu0 0.0
        %1138 = vmatpush1.msra.mxu0 %v1096
        %1139 = vmatprep.subr.mxu0 0.0
        %1140 = vmatpush1.msra.mxu0 %v1097
        %1141 = vmatprep.subr.mxu0 0.0
        %1142 = vmatpush1.msra.mxu0 0.0
        %1143 = vmatprep.subr.mxu0 0.0
        %1144 = vmatpush1.msra.mxu0 0.0
        %1145 = vmatprep.subr.mxu0 0.0
        %1146 = vmatpush1.msra.mxu0 0.0
        %1147 = vmatprep.subr.mxu0 0.0
        %1148 = vmatpush1.msra.mxu0 0.0
        %1149 = vmatprep.subr.mxu0 0.0
        %1150 = vmatpush1.msra.mxu0 0.0
        %1151 = vmatprep.subr.mxu0 0.0
        %1152 = vmatpush1.msra.mxu0 0.0
        %1153 = vmatprep.subr.mxu0 0.0
        %1154 = vmatpush1.msra.mxu0 0.0
        %1155 = vmatprep.subr.mxu0 0.0
        %1156 = vmatpush1.msra.mxu0 0.0
        %1157 = vmatprep.subr.mxu0 0.0
        %1158 = vmatpush1.msra.mxu0 0.0
        %1159 = vmatprep.subr.mxu0 0.0
        %1160 = vmatpush1.msra.mxu0 0.0
        %1161 = vmatprep.subr.mxu0 0.0
        %1162 = vmatpush1.msra.mxu0 0.0
        %1163 = vmatprep.subr.mxu0 0.0
        %1164 = vmatpush1.msra.mxu0 0.0
        %1165 = vmatprep.subr.mxu0 0.0
        %1166 = vmatpush1.msra.mxu0 0.0
        %1167 = vmatprep.subr.mxu0 0.0
        %1168 = vmatpush1.msra.mxu0 0.0
        %1169 = vmatprep.subr.mxu0 0.0
        %1170 = vmatpush1.msra.mxu0 0.0
        %1171 = vmatprep.subr.mxu0 0.0
        %1172 = vmatpush1.msra.mxu0 0.0
        %1173 = vmatprep.mubr.f32.mxu0 0.0
        %1174 = vmatmul.mubr.f32.gmra.mrb[0].mxu0 %v1079
        %v1175 = vpop.f32.mrb[0].mxu0
        %v1176 = vadd.f32 %v1107, %v1175
        %v1177 = vpop.f32.mrb[0].mxu0
        %1178 = vmatprep.mubr.f32.mxu0 0.0
        %1179 = vmatmul.mubr.f32.gmra.mrb[0].mxu0 %v1080
        %v1180 = vpop.f32.mrb[0].mxu0
        %v1181 = vadd.f32 %v1107, %v1180
        %v1182 = vpop.f32.mrb[0].mxu0
        %1183 = vdwg.mxu0
        %v1184 = vmul.f32 %v1176, 0.2
        %v1185 = vmul.f32 %v1181, 0.2
        %v1186 = vmax.f32 %v1176, %v1184
        %v1187 = vmax.f32 %v1181, %v1185
        %1188 = vst [vmem:[%s282] sm:$0xff] %v1186
        %1189 = vst [vmem:[%s282 + $0x8] sm:$0xff] %v1187
        %s1190 = sand.u32 %s143, 1
        %s1191 = scalar_lea.sflag [#allocation4], %s1190
        %s1192 = sand.u32 %s143, 1
        %s1193 = smul.addr %s1192, 16
        %s1194 = scalar_lea.vmem [#allocation11], %s1193
        // Predicated region
        $region57: #{tpu_custom_call.1} parent=39 // pred_check
          %p1195 = pneg %p153
        $region58: #{tpu_custom_call.1} parent=39 // pred_check_branch
          %1197 = sbr.rel (%p1195) target = $region60
        $region59: #{tpu_custom_call.1} parent=39 // pred_region
          %s1198 = smul.u32 2, %s25
          %s1200 = ssub.s32 256, 256
          %1201 = vsyncadd %s1191, %s1200
          %s1202 = smul.addr %s1198, 128
          %s1203 = scalar_lea.hbm %s5, %s1202
          %s1204 = sshll.u32 %s1194, 4
          %s1205 = int_to_ptr.vmem [resolvable:$true] %s1204
          %1210 = dma.vmem_to_hbm [thread:$0]  %s1205, 256, %s1203, %s1191, 128, 128, 8
        $region60: #{tpu_custom_call.1} parent=39 // pred_fallthru
          _
      $region40: #{tpu_custom_call.1} parent=5 // pred_fallthru
        _
      %p1211 = scmp.le.s32.totalorder 2, %s20
      // Predicated region
      $region61: #{tpu_custom_call.1} parent=5 // pred_check
        %p1212 = pneg %p1211
      $region62: #{tpu_custom_call.1} parent=5 // pred_check_branch
        %1214 = sbr.rel (%p1212) target = $region64
      $region63: #{tpu_custom_call.1} parent=5 // pred_region
        %s1215 = ssub.s32 %s20, 2
        // Predicated region
        $region65: #{tpu_custom_call.1} parent=63 // pred_check
          %p1216 = pneg %p159
        $region66: #{tpu_custom_call.1} parent=63 // pred_check_branch
          %1218 = sbr.rel (%p1216) target = $region68
        $region67: #{tpu_custom_call.1} parent=63 // pred_region
          %s1219 = sand.u32 %s144, 1
          %s1220 = scalar_lea.sflag [#allocation4], %s1219
          %s1221 = sand.u32 %s144, 1
          %s1222 = smul.addr %s1221, 16
          %s1223 = scalar_lea.vmem [#allocation11], %s1222
          %1224 = dma.done %s1220, 256
        $region68: #{tpu_custom_call.1} parent=63 // pred_fallthru
          _
      $region64: #{tpu_custom_call.1} parent=5 // pred_fallthru
        _
    $region6: #{tpu_custom_call.1} parent=1 // loop_footer
      %s24 = sadd.s32 1, %s20
    $region7: #{tpu_custom_call.1} parent=1 // loop_footer_branch
      %19 = sbr.rel target = $region3
    $region8: #{tpu_custom_call.1} parent=1 // loop_exit
      _
    %1225 = vsyncpa [#allocation3], 1
    %s1226 = scalar_lea.sflag [#allocation3], 1
    %1227 = vsyncpa %s1226, 1
    %1228 = vsyncpa [#allocation10], 1
    %1229 = vsyncpa [#allocation4], 1
    %s1230 = scalar_lea.sflag [#allocation4], 1
    %1231 = vsyncpa %s1230, 1
    %1232 = vsyncpa [#allocation5], 1
    %s1233 = scalar_lea.sflag [#allocation5], 1
    %1234 = vsyncpa %s1233, 1
    %1235 = vsyncpa [#allocation6], 1
    %s1236 = scalar_lea.sflag [#allocation6], 1
    %1237 = vsyncpa %s1236, 1

</llo_original>
